<compile_context>
chip_gen: v5e
topology: v5e:2x2
jax: 0.10.0
libtpu: 0.0.40
codegen_flags: <defaults>
</compile_context>

<pallas_src>
import jax
import jax.numpy as jnp
from jax.experimental import pallas as pl
from jax.experimental.pallas import tpu as pltpu

D = 512  # hidden / CLIP embedding dim used throughout Retriever_v3


def retriever_kernel(hx_ref, act_ref,
                     wvh_ref, bvh_ref, wv1_ref, bv1_ref,
                     w12_ref, b12_ref,
                     p_ref, q_ref, hx2_ref):
    B, N, d = act_ref.shape

    # ---- Attn_his(normalize(txt), hx_his, hx_his), kv seq len == 1 ----------
    # softmax over a length-1 kv axis is identically 1, so the attention output
    # is exactly the V projection of hx_his (Q/K paths and txt are dead code).
    hx = hx_ref[...]                                                     # (B, D) f32
    vh = jnp.dot(hx.astype(jnp.bfloat16), wvh_ref[...],
                 preferred_element_type=jnp.float32) + bvh_ref[...]      # (B, D) f32
    # normalize with EUP rsqrt instead of a VPU divide
    hx2 = vh * jax.lax.rsqrt(jnp.sum(vh * vh, axis=-1, keepdims=True))   # (B, D)
    hx2_ref[...] = hx2

    # ---- P[b, i] = clamp((hx2[b] . action[b, i] + 1) / 2) -------------------
    act = act_ref[...]                                                   # (B, N, D)
    p = jnp.sum(act * hx2[:, None, :], axis=-1)                          # (B, N)
    p_ref[...] = jnp.clip((p + 1.0) * 0.5, 1e-6, 1.0 - 1e-6)

    # ---- Attn1(action_i, hx2, hx2) -> fc12 -> sigmoid -> 60*q - 30 ----------
    # Same length-1 softmax: x[b, i, :] == V-projection of hx2 for every i, so
    # fc12 is computed once per batch row and broadcast across the N candidates.
    v1 = jnp.dot(hx2.astype(jnp.bfloat16), wv1_ref[...],
                 preferred_element_type=jnp.float32) + bv1_ref[...]      # (B, D)
    logits = jnp.sum(v1 * w12_ref[...], axis=-1, keepdims=True) + b12_ref[...]  # (B, 1)
    q = 60.0 * jax.nn.sigmoid(logits) - 30.0                             # (B, 1)
    q_ref[...] = jnp.broadcast_to(q, (B, N))


def retriever_v3_forward(img, txt, action, hx_his, r, params):
    """Returns (P, Q, b_hx_his_) matching the PyTorch forward()."""
    del img, r   # never influence the outputs of forward()
    del txt      # only feeds the dead Q projection of Attn_his (len-1 softmax == 1)
    B, N, d = action.shape
    wah, bah, wa1, ba1, w12, b12 = params

    # Only the V projections of the two attentions survive dead-code removal.
    # Slice + bf16-cast here (pure constants: in a repeatedly-called setting
    # these would be prepared once and reused / kept resident across calls).
    wvh = wah[2].astype(jnp.bfloat16)          # Attn_his Wv  (D, D) bf16
    wv1 = wa1[2].astype(jnp.bfloat16)          # Attn1    Wv  (D, D) bf16
    bvh = bah[2]                               # (1, D) f32
    bv1 = ba1[2]                               # (1, D) f32

    vmem = pl.BlockSpec(memory_space=pltpu.MemorySpace.VMEM)
    inputs = (hx_his, action, wvh, bvh, wv1, bv1, w12, b12)

    P, Qf, hx2 = pl.pallas_call(
        retriever_kernel,
        out_shape=(
            jax.ShapeDtypeStruct((B, N), jnp.float32),   # P
            jax.ShapeDtypeStruct((B, N), jnp.float32),   # Q (last dim squeezed)
            jax.ShapeDtypeStruct((B, d), jnp.float32),   # hx2
        ),
        in_specs=[vmem] * len(inputs),
        out_specs=(vmem, vmem, vmem),
    )(*inputs)

    return P, Qf.reshape(B, N, 1), hx2.reshape(B, 1, d)


def make_params(key):
    ks = jax.random.split(key, 6)
    wah = 0.02 * jax.random.normal(ks[0], (3, D, D), jnp.float32)   # Attn_his Wq,Wk,Wv
    bah = 0.01 * jax.random.normal(ks[1], (3, 1, D), jnp.float32)
    wa1 = 0.02 * jax.random.normal(ks[2], (3, D, D), jnp.float32)   # Attn1  Wq,Wk,Wv
    ba1 = 0.01 * jax.random.normal(ks[3], (3, 1, D), jnp.float32)
    w12 = 0.02 * jax.random.normal(ks[4], (1, D), jnp.float32)      # fc12 weight (1, 512)
    b12 = 0.01 * jax.random.normal(ks[5], (1, 1), jnp.float32)      # fc12 bias
    return (wah, bah, wa1, ba1, w12, b12)


def reference_forward(txt, action, hx_his, params):
    """Pure-JAX f32 reference implementing the FULL original math (incl. the
    dead Q/K projections and the length-1 softmax), to validate the kernel."""
    wah, bah, wa1, ba1, w12, b12 = params
    d = txt.shape[-1]
    scale = 1.0 / jnp.sqrt(jnp.float32(d))
    env = txt / jnp.linalg.norm(txt, axis=-1, keepdims=True)
    qh = env @ wah[0] + bah[0]
    kh = hx_his @ wah[1] + bah[1]
    vh = hx_his @ wah[2] + bah[2]
    sh = jnp.sum(qh * kh, axis=-1, keepdims=True) * scale
    hx2 = jnp.exp(sh - sh) * vh
    hx2 = hx2 / jnp.linalg.norm(hx2, axis=-1, keepdims=True)
    p = jnp.clip((jnp.einsum('bnd,bd->bn', action, hx2) + 1.0) * 0.5,
                 1e-6, 1.0 - 1e-6)
    q1 = jnp.einsum('bnd,de->bne', action, wa1[0]) + ba1[0]
    k1 = hx2 @ wa1[1] + ba1[1]
    v1 = hx2 @ wa1[2] + ba1[2]
    s1 = jnp.sum(q1 * k1[:, None, :], axis=-1) * scale
    x = jnp.exp(s1 - s1)[:, :, None] * v1[:, None, :]
    logits = jnp.sum(x * w12[None, :, :], axis=-1) + b12[0, 0]
    q = 60.0 * jax.nn.sigmoid(logits) - 30.0
    return p, q[..., None], hx2[:, None, :]


if __name__ == "__main__":
    key = jax.random.PRNGKey(0)
    k_img, k_txt, k_act, k_hx, k_par = jax.random.split(key, 5)

    B, N = 2, 8  # batch, number of candidate actions
    img = jax.random.normal(k_img, (B, D), jnp.float32)
    txt = jax.random.normal(k_txt, (B, D), jnp.float32)
    action = jax.random.normal(k_act, (B, N, D), jnp.float32)
    action = action / jnp.linalg.norm(action, axis=-1, keepdims=True)
    hx_his = jax.random.normal(k_hx, (B, D), jnp.float32)
    r = jnp.zeros((B, 1), jnp.float32)

    params = make_params(k_par)

    P, Q, b_hx = retriever_v3_forward(img, txt, action, hx_his, r, params)
    jax.block_until_ready((P, Q, b_hx))

    assert P.shape == (B, N)
    assert Q.shape == (B, N, 1)
    assert b_hx.shape == (B, 1, D)
    assert bool(jnp.all(P >= 1e-6)) and bool(jnp.all(P <= 1.0 - 1e-6))
    assert bool(jnp.all(jnp.isfinite(Q)))

    # numerics check vs. pure-JAX f32 reference of the full (un-pruned) math;
    # generous tolerances cover the bf16 weight cast.
    P_ref, Q_ref, hx_ref = reference_forward(txt, action, hx_his, params)
    assert bool(jnp.max(jnp.abs(P - P_ref)) < 1e-2)
    assert bool(jnp.max(jnp.abs(Q - Q_ref)) < 1e-1)
    assert bool(jnp.max(jnp.abs(b_hx - hx_ref)) < 1e-2)

    print("KERNEL_OK")
</pallas_src>

<mosaic_0001>
module attributes {stable_mosaic.version = 11 : i64} {
  func.func @retriever_kernel(%arg0: memref<2x512xf32, #tpu.memory_space<vmem>>, %arg1: memref<2x8x512xf32, #tpu.memory_space<vmem>>, %arg2: memref<512x512xbf16, #tpu.memory_space<vmem>>, %arg3: memref<1x512xf32, #tpu.memory_space<vmem>>, %arg4: memref<512x512xbf16, #tpu.memory_space<vmem>>, %arg5: memref<1x512xf32, #tpu.memory_space<vmem>>, %arg6: memref<1x512xf32, #tpu.memory_space<vmem>>, %arg7: memref<1x1xf32, #tpu.memory_space<vmem>>, %arg8: memref<2x8xf32, #tpu.memory_space<vmem>>, %arg9: memref<2x8xf32, #tpu.memory_space<vmem>>, %arg10: memref<2x512xf32, #tpu.memory_space<vmem>>) attributes {dimension_semantics = [], scalar_prefetch = 0 : i64, scratch_operands = 0 : i64, tpu.core_type = #tpu.core_type<tc>} {
    %c0 = arith.constant 0 : index
    %c0_0 = arith.constant 0 : index
    %0 = vector.load %arg0[%c0, %c0_0] : memref<2x512xf32, #tpu.memory_space<vmem>>, vector<2x512xf32>
    %1 = arith.truncf %0 : vector<2x512xf32> to vector<2x512xbf16>
    %c0_1 = arith.constant 0 : index
    %c0_2 = arith.constant 0 : index
    %2 = vector.load %arg2[%c0_1, %c0_2] : memref<512x512xbf16, #tpu.memory_space<vmem>>, vector<512x512xbf16>
    %cst = arith.constant dense<0.000000e+00> : vector<2x512xf32>
    %3 = tpu.matmul %1, %2, %cst {dimension_numbers = #tpu.dot_dimension_numbers<[1], [0], [0], [1], [0, 0, 1, 1], [], []>} : vector<2x512xbf16>, vector<512x512xbf16>, vector<2x512xf32> -> vector<2x512xf32>
    %c0_3 = arith.constant 0 : index
    %c0_4 = arith.constant 0 : index
    %4 = vector.load %arg3[%c0_3, %c0_4] : memref<1x512xf32, #tpu.memory_space<vmem>>, vector<1x512xf32>
    %5 = vector.broadcast %4 : vector<1x512xf32> to vector<2x512xf32>
    %6 = arith.addf %3, %5 : vector<2x512xf32>
    %7 = arith.mulf %6, %6 : vector<2x512xf32>
    %cst_5 = arith.constant dense<0.000000e+00> : vector<2xf32>
    %8 = vector.multi_reduction <add>, %7, %cst_5 [1] : vector<2x512xf32> to vector<2xf32>
    %9 = vector.shape_cast %8 : vector<2xf32> to vector<2x1xf32>
    %10 = math.rsqrt %9 : vector<2x1xf32>
    %11 = vector.broadcast %10 : vector<2x1xf32> to vector<2x512xf32>
    %12 = arith.mulf %6, %11 : vector<2x512xf32>
    %c0_6 = arith.constant 0 : index
    %c0_7 = arith.constant 0 : index
    %13 = vector.load %arg10[%c0_6, %c0_7] : memref<2x512xf32, #tpu.memory_space<vmem>>, vector<2x512xf32>
    tpu.vector_store %arg10[%c0_6, %c0_7], %12 {strides = array<i32>} : memref<2x512xf32, #tpu.memory_space<vmem>>, vector<2x512xf32>,
    %c0_8 = arith.constant 0 : index
    %c0_9 = arith.constant 0 : index
    %c0_10 = arith.constant 0 : index
    %14 = vector.load %arg1[%c0_8, %c0_9, %c0_10] : memref<2x8x512xf32, #tpu.memory_space<vmem>>, vector<2x8x512xf32>
    %15 = vector.shape_cast %12 : vector<2x512xf32> to vector<2x1x512xf32>
    %16 = vector.broadcast %15 : vector<2x1x512xf32> to vector<2x8x512xf32>
    %17 = arith.mulf %14, %16 : vector<2x8x512xf32>
    %cst_11 = arith.constant dense<0.000000e+00> : vector<2x8xf32>
    %18 = vector.multi_reduction <add>, %17, %cst_11 [2] : vector<2x8x512xf32> to vector<2x8xf32>
    %cst_12 = arith.constant 1.000000e+00 : f32
    %19 = vector.broadcast %cst_12 : f32 to vector<2x8xf32>
    %20 = arith.addf %18, %19 : vector<2x8xf32>
    %cst_13 = arith.constant 5.000000e-01 : f32
    %21 = vector.broadcast %cst_13 : f32 to vector<2x8xf32>
    %22 = arith.mulf %20, %21 : vector<2x8xf32>
    %cst_14 = arith.constant 9.99999997E-7 : f32
    %cst_15 = arith.constant 0.999998986 : f32
    %23 = vector.broadcast %cst_14 : f32 to vector<2x8xf32>
    %24 = arith.maximumf %23, %22 : vector<2x8xf32>
    %25 = vector.broadcast %cst_15 : f32 to vector<2x8xf32>
    %26 = arith.minimumf %25, %24 : vector<2x8xf32>
    %c0_16 = arith.constant 0 : index
    %c0_17 = arith.constant 0 : index
    %27 = vector.load %arg8[%c0_16, %c0_17] : memref<2x8xf32, #tpu.memory_space<vmem>>, vector<2x8xf32>
    tpu.vector_store %arg8[%c0_16, %c0_17], %26 {strides = array<i32>} : memref<2x8xf32, #tpu.memory_space<vmem>>, vector<2x8xf32>,
    %28 = arith.truncf %12 : vector<2x512xf32> to vector<2x512xbf16>
    %c0_18 = arith.constant 0 : index
    %c0_19 = arith.constant 0 : index
    %29 = vector.load %arg4[%c0_18, %c0_19] : memref<512x512xbf16, #tpu.memory_space<vmem>>, vector<512x512xbf16>
    %cst_20 = arith.constant dense<0.000000e+00> : vector<2x512xf32>
    %30 = tpu.matmul %28, %29, %cst_20 {dimension_numbers = #tpu.dot_dimension_numbers<[1], [0], [0], [1], [0, 0, 1, 1], [], []>} : vector<2x512xbf16>, vector<512x512xbf16>, vector<2x512xf32> -> vector<2x512xf32>
    %c0_21 = arith.constant 0 : index
    %c0_22 = arith.constant 0 : index
    %31 = vector.load %arg5[%c0_21, %c0_22] : memref<1x512xf32, #tpu.memory_space<vmem>>, vector<1x512xf32>
    %32 = vector.broadcast %31 : vector<1x512xf32> to vector<2x512xf32>
    %33 = arith.addf %30, %32 : vector<2x512xf32>
    %c0_23 = arith.constant 0 : index
    %c0_24 = arith.constant 0 : index
    %34 = vector.load %arg6[%c0_23, %c0_24] : memref<1x512xf32, #tpu.memory_space<vmem>>, vector<1x512xf32>
    %35 = vector.broadcast %34 : vector<1x512xf32> to vector<2x512xf32>
    %36 = arith.mulf %33, %35 : vector<2x512xf32>
    %cst_25 = arith.constant dense<0.000000e+00> : vector<2xf32>
    %37 = vector.multi_reduction <add>, %36, %cst_25 [1] : vector<2x512xf32> to vector<2xf32>
    %38 = vector.shape_cast %37 : vector<2xf32> to vector<2x1xf32>
    %c0_26 = arith.constant 0 : index
    %c0_27 = arith.constant 0 : index
    %39 = vector.load %arg7[%c0_26, %c0_27] : memref<1x1xf32, #tpu.memory_space<vmem>>, vector<1x1xf32>
    %40 = vector.broadcast %39 : vector<1x1xf32> to vector<2x1xf32>
    %41 = arith.addf %38, %40 : vector<2x1xf32>
    %42 = arith.negf %41 : vector<2x1xf32>
    %43 = math.exp %42 : vector<2x1xf32>
    %cst_28 = arith.constant 1.000000e+00 : f32
    %44 = vector.broadcast %cst_28 : f32 to vector<2x1xf32>
    %45 = arith.addf %44, %43 : vector<2x1xf32>
    %46 = arith.divf %44, %45 : vector<2x1xf32>
    %cst_29 = arith.constant 6.000000e+01 : f32
    %47 = vector.broadcast %cst_29 : f32 to vector<2x1xf32>
    %48 = arith.mulf %47, %46 : vector<2x1xf32>
    %cst_30 = arith.constant 3.000000e+01 : f32
    %49 = vector.broadcast %cst_30 : f32 to vector<2x1xf32>
    %50 = arith.subf %48, %49 : vector<2x1xf32>
    %51 = vector.shape_cast %50 : vector<2x1xf32> to vector<2x1xf32>
    %52 = vector.broadcast %51 : vector<2x1xf32> to vector<2x8xf32>
    %c0_31 = arith.constant 0 : index
    %c0_32 = arith.constant 0 : index
    %53 = vector.load %arg9[%c0_31, %c0_32] : memref<2x8xf32, #tpu.memory_space<vmem>>, vector<2x8xf32>
    tpu.vector_store %arg9[%c0_31, %c0_32], %52 {strides = array<i32>} : memref<2x8xf32, #tpu.memory_space<vmem>>, vector<2x8xf32>,
    return
  }
}

</mosaic_0001>

<llo_original>
// kernel: tpu_custom_call.1
$region0: #{tpu_custom_call.1}
  #allocation0 [shape = 'u32[]', space=smem, size = 0x4, offset = 0x4, fixed_abs, tag = 'smem constant byte address 0x4 - core index']
  #allocation1 [shape = 'u32[72,128]{1,0:T(1,128)}', space=vmem, size = 0x9000, scoped, tag = 'internal scratch']
  #allocation2 [shape = 'f32[1,1]{1,0:T(1,128)S(1)}', space=vmem, size = 0x200, scoped, tag = 'scoped memory for tpu_custom_call.1']
  %s0 = inlined_call_operand.hbm [shape: f32[2,512], index: 0, kind: input, shape index: {}]
  %s1 = inlined_call_operand.hbm [shape: f32[2,8,512], index: 1, kind: input, shape index: {}]
  %s2 = inlined_call_operand.hbm [shape: bf16[512,512], index: 2, kind: input, shape index: {}]
  %s3 = inlined_call_operand.vmem [shape: f32[1,512], index: 3, kind: input, shape index: {}]
  %s4 = inlined_call_operand.hbm [shape: bf16[512,512], index: 4, kind: input, shape index: {}]
  %s5 = inlined_call_operand.hbm [shape: f32[1,512], index: 5, kind: input, shape index: {}]
  %s6 = inlined_call_operand.hbm [shape: f32[1,512], index: 6, kind: input, shape index: {}]
  %s7 = inlined_call_operand.<no memory space> [shape: f32[1,1], index: 7, kind: input, shape index: {}]
  %s8 = inlined_call_operand.hbm [shape: f32[2,8], index: 8, kind: output, shape index: {0}]
  %s9 = inlined_call_operand.hbm [shape: f32[2,8], index: 9, kind: output, shape index: {1}]
  %s10 = inlined_call_operand.hbm [shape: f32[2,512], index: 10, kind: output, shape index: {2}]
  %11 = xla_tuple %s8, %s9, %s10
  %s12 = sld [smem:[#allocation0]]
  $region82: #{tpu_custom_call.1} parent=0
    _
  %s14 = ssub.s32 1, %s12
  %s15 = scalar_select 0, %s14, %s12
  %v16 = vstv %s7
  %17 = vst [vmem:[#allocation2] sm:$0x1] %v16
  $region1: #{tpu_custom_call.1} parent=0
    #allocation3 [shape = 'u8[4096]{0}', space=vmem, size = 0x1000, scoped, tag = 'input window, operand 0, single buffered']
    #allocation4 [shape = 's32[1]{0}', space=sflag, size = 0x4, scoped, tag = 'scoped memory for tpu_custom_call.1']
    #allocation5 [shape = 's32[1]{0}', space=sflag, size = 0x4, scoped, tag = 'scoped memory for tpu_custom_call.1']
    #allocation6 [shape = 'u8[32768]{0}', space=vmem, size = 0x8000, scoped, tag = 'input window, operand 1, single buffered']
    #allocation7 [shape = 's32[1]{0}', space=sflag, size = 0x4, scoped, tag = 'scoped memory for tpu_custom_call.1']
    #allocation8 [shape = 'u8[524288]{0}', space=vmem, size = 0x80000, scoped, tag = 'input window, operand 2, single buffered']
    #allocation9 [shape = 'u8[524288]{0}', space=vmem, size = 0x80000, scoped, tag = 'input window, operand 4, single buffered']
    #allocation10 [shape = 's32[1]{0}', space=sflag, size = 0x4, scoped, tag = 'scoped memory for tpu_custom_call.1']
    #allocation11 [shape = 'u8[2048]{0}', space=vmem, size = 0x800, scoped, tag = 'input window, operand 5, single buffered']
    #allocation12 [shape = 'u8[2048]{0}', space=vmem, size = 0x800, scoped, tag = 'input window, operand 6, single buffered']
    #allocation13 [shape = 's32[1]{0}', space=sflag, size = 0x4, scoped, tag = 'scoped memory for tpu_custom_call.1']
    #allocation14 [shape = 'u8[1024]{0}', space=vmem, size = 0x400, scoped, tag = 'output window, operand 0, single buffered']
    #allocation15 [shape = 'u8[1024]{0}', space=vmem, size = 0x400, scoped, tag = 'output window, operand 1, single buffered']
    #allocation16 [shape = 's32[1]{0}', space=sflag, size = 0x4, scoped, tag = 'scoped memory for tpu_custom_call.1']
    #allocation17 [shape = 'u8[4096]{0}', space=vmem, size = 0x1000, scoped, tag = 'output window, operand 2, single buffered']
    %18 = vsyncpa [#allocation4], 0
    %19 = vsyncpa [#allocation7], 0
    %20 = vsyncpa [#allocation10], 0
    %21 = vsyncpa [#allocation13], 0
    %22 = vsyncpa [#allocation5], 0
    %23 = vsyncpa [#allocation16], 0
    // Predicated region
    $region2: #{tpu_custom_call.1} parent=1 // pred_check
      _
    $region3: #{tpu_custom_call.1} parent=1 // pred_check_branch
      %25 = sbr.rel (0) target = $region5
    $region4: #{tpu_custom_call.1} parent=1 // pred_region
      %27 = vsyncadd [#allocation4], 0
      %s29 = sshll.u32 %s0, 4
      %s30 = int_to_ptr.hbm [resolvable:$true] %s29
      %s31 = sshll.u32 [#allocation3], 4
      %s32 = int_to_ptr.vmem [resolvable:$true] %s31
      %34 = dma.hbm_to_vmem [thread:$0]  %s30, 128, %s32, [#allocation4]
    $region5: #{tpu_custom_call.1} parent=1 // pred_fallthru
      _
    // Predicated region
    $region6: #{tpu_custom_call.1} parent=1 // pred_check
      _
    $region7: #{tpu_custom_call.1} parent=1 // pred_check_branch
      %36 = sbr.rel (0) target = $region9
    $region8: #{tpu_custom_call.1} parent=1 // pred_region
      %38 = vsyncadd [#allocation7], 0
      %s39 = sshll.u32 %s1, 4
      %s40 = int_to_ptr.hbm [resolvable:$true] %s39
      %s41 = sshll.u32 [#allocation6], 4
      %s42 = int_to_ptr.vmem [resolvable:$true] %s41
      %47 = dma.hbm_to_vmem [thread:$0]  %s40, 1024, %s42, [#allocation7], 512, 512, 32
    $region9: #{tpu_custom_call.1} parent=1 // pred_fallthru
      _
    // Predicated region
    $region10: #{tpu_custom_call.1} parent=1 // pred_check
      _
    $region11: #{tpu_custom_call.1} parent=1 // pred_check_branch
      %49 = sbr.rel (0) target = $region13
    $region12: #{tpu_custom_call.1} parent=1 // pred_region
      %51 = vsyncadd [#allocation7], 0
      %s52 = sshll.u32 %s2, 4
      %s53 = int_to_ptr.hbm [resolvable:$true] %s52
      %s54 = sshll.u32 [#allocation8], 4
      %s55 = int_to_ptr.vmem [resolvable:$true] %s54
      %60 = dma.hbm_to_vmem [thread:$0]  %s53, 16384, %s55, [#allocation7], 256, 256, 16
    $region13: #{tpu_custom_call.1} parent=1 // pred_fallthru
      _
    // Predicated region
    $region14: #{tpu_custom_call.1} parent=1 // pred_check
      _
    $region15: #{tpu_custom_call.1} parent=1 // pred_check_branch
      %62 = sbr.rel (0) target = $region17
    $region16: #{tpu_custom_call.1} parent=1 // pred_region
      _
    $region17: #{tpu_custom_call.1} parent=1 // pred_fallthru
      _
    // Predicated region
    $region18: #{tpu_custom_call.1} parent=1 // pred_check
      _
    $region19: #{tpu_custom_call.1} parent=1 // pred_check_branch
      %64 = sbr.rel (0) target = $region21
    $region20: #{tpu_custom_call.1} parent=1 // pred_region
      %66 = vsyncadd [#allocation10], 0
      %s67 = sshll.u32 %s4, 4
      %s68 = int_to_ptr.hbm [resolvable:$true] %s67
      %s69 = sshll.u32 [#allocation9], 4
      %s70 = int_to_ptr.vmem [resolvable:$true] %s69
      %75 = dma.hbm_to_vmem [thread:$0]  %s68, 16384, %s70, [#allocation10], 256, 256, 16
    $region21: #{tpu_custom_call.1} parent=1 // pred_fallthru
      _
    // Predicated region
    $region22: #{tpu_custom_call.1} parent=1 // pred_check
      _
    $region23: #{tpu_custom_call.1} parent=1 // pred_check_branch
      %77 = sbr.rel (0) target = $region25
    $region24: #{tpu_custom_call.1} parent=1 // pred_region
      %79 = vsyncadd [#allocation10], 0
      %s81 = sshll.u32 %s5, 4
      %s82 = int_to_ptr.hbm [resolvable:$true] %s81
      %s83 = sshll.u32 [#allocation11], 4
      %s84 = int_to_ptr.vmem [resolvable:$true] %s83
      %86 = dma.hbm_to_vmem [thread:$0]  %s82, 64, %s84, [#allocation10]
    $region25: #{tpu_custom_call.1} parent=1 // pred_fallthru
      _
    // Predicated region
    $region26: #{tpu_custom_call.1} parent=1 // pred_check
      _
    $region27: #{tpu_custom_call.1} parent=1 // pred_check_branch
      %88 = sbr.rel (0) target = $region29
    $region28: #{tpu_custom_call.1} parent=1 // pred_region
      %90 = vsyncadd [#allocation13], 0
      %s92 = sshll.u32 %s6, 4
      %s93 = int_to_ptr.hbm [resolvable:$true] %s92
      %s94 = sshll.u32 [#allocation12], 4
      %s95 = int_to_ptr.vmem [resolvable:$true] %s94
      %97 = dma.hbm_to_vmem [thread:$0]  %s93, 64, %s95, [#allocation13]
    $region29: #{tpu_custom_call.1} parent=1 // pred_fallthru
      _
    // Predicated region
    $region30: #{tpu_custom_call.1} parent=1 // pred_check
      _
    $region31: #{tpu_custom_call.1} parent=1 // pred_check_branch
      %99 = sbr.rel (0) target = $region33
    $region32: #{tpu_custom_call.1} parent=1 // pred_region
      _
    $region33: #{tpu_custom_call.1} parent=1 // pred_fallthru
      _
    // Predicated region
    $region34: #{tpu_custom_call.1} parent=1 // pred_check
      _
    $region35: #{tpu_custom_call.1} parent=1 // pred_check_branch
      %101 = sbr.rel (0) target = $region37
    $region36: #{tpu_custom_call.1} parent=1 // pred_region
      %103 = dma.done [#allocation4], 128
    $region37: #{tpu_custom_call.1} parent=1 // pred_fallthru
      _
    // Predicated region
    $region38: #{tpu_custom_call.1} parent=1 // pred_check
      _
    $region39: #{tpu_custom_call.1} parent=1 // pred_check_branch
      %105 = sbr.rel (0) target = $region41
    $region40: #{tpu_custom_call.1} parent=1 // pred_region
      %107 = dma.done [#allocation7], 1024
    $region41: #{tpu_custom_call.1} parent=1 // pred_fallthru
      _
    // Predicated region
    $region42: #{tpu_custom_call.1} parent=1 // pred_check
      _
    $region43: #{tpu_custom_call.1} parent=1 // pred_check_branch
      %109 = sbr.rel (0) target = $region45
    $region44: #{tpu_custom_call.1} parent=1 // pred_region
      %111 = dma.done [#allocation7], 16384
    $region45: #{tpu_custom_call.1} parent=1 // pred_fallthru
      _
    // Predicated region
    $region46: #{tpu_custom_call.1} parent=1 // pred_check
      _
    $region47: #{tpu_custom_call.1} parent=1 // pred_check_branch
      %113 = sbr.rel (0) target = $region49
    $region48: #{tpu_custom_call.1} parent=1 // pred_region
      %115 = dma.done [#allocation10], 16384
    $region49: #{tpu_custom_call.1} parent=1 // pred_fallthru
      _
    // Predicated region
    $region50: #{tpu_custom_call.1} parent=1 // pred_check
      _
    $region51: #{tpu_custom_call.1} parent=1 // pred_check_branch
      %117 = sbr.rel (0) target = $region53
    $region52: #{tpu_custom_call.1} parent=1 // pred_region
      %119 = dma.done [#allocation10], 64
    $region53: #{tpu_custom_call.1} parent=1 // pred_fallthru
      _
    // Predicated region
    $region54: #{tpu_custom_call.1} parent=1 // pred_check
      _
    $region55: #{tpu_custom_call.1} parent=1 // pred_check_branch
      %121 = sbr.rel (0) target = $region57
    $region56: #{tpu_custom_call.1} parent=1 // pred_region
      %123 = dma.done [#allocation13], 64
    $region57: #{tpu_custom_call.1} parent=1 // pred_fallthru
      _
    %v124 = vld [vmem:[#allocation3] sm:$0xff]
    %126 = vst [vmem:[#allocation1] ss:$4 sm:$0xff] %v124
    %v127 = vld.sshfl [vmem:[#allocation1] sm:$0xff pattern:$0x73625140]
    %v128 = vld.sshfl [vmem:[#allocation1 + $0x8] sm:$0xff pattern:$0x73625140]
    %v129 = vld.sshfl [vmem:[#allocation1 + $0x10] sm:$0xff pattern:$0x73625140]
    %v130 = vld.sshfl [vmem:[#allocation1 + $0x18] sm:$0xff pattern:$0x73625140]
    %v135 = vpack.c.bf16 %v127, %v127
    %v136 = vpack.c.bf16 %v128, %v128
    %v137 = vpack.c.bf16 %v129, %v129
    %v138 = vpack.c.bf16 %v130, %v130
    %v139 = vld [vmem:[#allocation8] sm:$0xff]
    %v140 = vld [vmem:[#allocation8 + $0x8] sm:$0xff]
    %v141 = vld [vmem:[#allocation8 + $0x10] sm:$0xff]
    %v142 = vld [vmem:[#allocation8 + $0x18] sm:$0xff]
    %v143 = vld [vmem:[#allocation8 + $0x20] sm:$0xff]
    %v144 = vld [vmem:[#allocation8 + $0x28] sm:$0xff]
    %v145 = vld [vmem:[#allocation8 + $0x30] sm:$0xff]
    %v146 = vld [vmem:[#allocation8 + $0x38] sm:$0xff]
    %v147 = vld [vmem:[#allocation8 + $0x40] sm:$0xff]
    %v148 = vld [vmem:[#allocation8 + $0x48] sm:$0xff]
    %v149 = vld [vmem:[#allocation8 + $0x50] sm:$0xff]
    %v150 = vld [vmem:[#allocation8 + $0x58] sm:$0xff]
    %v151 = vld [vmem:[#allocation8 + $0x60] sm:$0xff]
    %v152 = vld [vmem:[#allocation8 + $0x68] sm:$0xff]
    %v153 = vld [vmem:[#allocation8 + $0x70] sm:$0xff]
    %v154 = vld [vmem:[#allocation8 + $0x78] sm:$0xff]
    %v155 = vld [vmem:[#allocation8 + $0x80] sm:$0xff]
    %v156 = vld [vmem:[#allocation8 + $0x88] sm:$0xff]
    %v157 = vld [vmem:[#allocation8 + $0x90] sm:$0xff]
    %v158 = vld [vmem:[#allocation8 + $0x98] sm:$0xff]
    %v159 = vld [vmem:[#allocation8 + $0xa0] sm:$0xff]
    %v160 = vld [vmem:[#allocation8 + $0xa8] sm:$0xff]
    %v161 = vld [vmem:[#allocation8 + $0xb0] sm:$0xff]
    %v162 = vld [vmem:[#allocation8 + $0xb8] sm:$0xff]
    %v163 = vld [vmem:[#allocation8 + $0xc0] sm:$0xff]
    %v164 = vld [vmem:[#allocation8 + $0xc8] sm:$0xff]
    %v165 = vld [vmem:[#allocation8 + $0xd0] sm:$0xff]
    %v166 = vld [vmem:[#allocation8 + $0xd8] sm:$0xff]
    %v167 = vld [vmem:[#allocation8 + $0xe0] sm:$0xff]
    %v168 = vld [vmem:[#allocation8 + $0xe8] sm:$0xff]
    %v169 = vld [vmem:[#allocation8 + $0xf0] sm:$0xff]
    %v170 = vld [vmem:[#allocation8 + $0xf8] sm:$0xff]
    %v171 = vld [vmem:[#allocation8 + $0x100] sm:$0xff]
    %v172 = vld [vmem:[#allocation8 + $0x108] sm:$0xff]
    %v173 = vld [vmem:[#allocation8 + $0x110] sm:$0xff]
    %v174 = vld [vmem:[#allocation8 + $0x118] sm:$0xff]
    %v175 = vld [vmem:[#allocation8 + $0x120] sm:$0xff]
    %v176 = vld [vmem:[#allocation8 + $0x128] sm:$0xff]
    %v177 = vld [vmem:[#allocation8 + $0x130] sm:$0xff]
    %v178 = vld [vmem:[#allocation8 + $0x138] sm:$0xff]
    %v179 = vld [vmem:[#allocation8 + $0x140] sm:$0xff]
    %v180 = vld [vmem:[#allocation8 + $0x148] sm:$0xff]
    %v181 = vld [vmem:[#allocation8 + $0x150] sm:$0xff]
    %v182 = vld [vmem:[#allocation8 + $0x158] sm:$0xff]
    %v183 = vld [vmem:[#allocation8 + $0x160] sm:$0xff]
    %v184 = vld [vmem:[#allocation8 + $0x168] sm:$0xff]
    %v185 = vld [vmem:[#allocation8 + $0x170] sm:$0xff]
    %v186 = vld [vmem:[#allocation8 + $0x178] sm:$0xff]
    %v187 = vld [vmem:[#allocation8 + $0x180] sm:$0xff]
    %v188 = vld [vmem:[#allocation8 + $0x188] sm:$0xff]
    %v189 = vld [vmem:[#allocation8 + $0x190] sm:$0xff]
    %v190 = vld [vmem:[#allocation8 + $0x198] sm:$0xff]
    %v191 = vld [vmem:[#allocation8 + $0x1a0] sm:$0xff]
    %v192 = vld [vmem:[#allocation8 + $0x1a8] sm:$0xff]
    %v193 = vld [vmem:[#allocation8 + $0x1b0] sm:$0xff]
    %v194 = vld [vmem:[#allocation8 + $0x1b8] sm:$0xff]
    %v195 = vld [vmem:[#allocation8 + $0x1c0] sm:$0xff]
    %v196 = vld [vmem:[#allocation8 + $0x1c8] sm:$0xff]
    %v197 = vld [vmem:[#allocation8 + $0x1d0] sm:$0xff]
    %v198 = vld [vmem:[#allocation8 + $0x1d8] sm:$0xff]
    %v199 = vld [vmem:[#allocation8 + $0x1e0] sm:$0xff]
    %v200 = vld [vmem:[#allocation8 + $0x1e8] sm:$0xff]
    %v201 = vld [vmem:[#allocation8 + $0x1f0] sm:$0xff]
    %v202 = vld [vmem:[#allocation8 + $0x1f8] sm:$0xff]
    %v203 = vld [vmem:[#allocation8 + $0x200] sm:$0xff]
    %v204 = vld [vmem:[#allocation8 + $0x208] sm:$0xff]
    %v205 = vld [vmem:[#allocation8 + $0x210] sm:$0xff]
    %v206 = vld [vmem:[#allocation8 + $0x218] sm:$0xff]
    %v207 = vld [vmem:[#allocation8 + $0x220] sm:$0xff]
    %v208 = vld [vmem:[#allocation8 + $0x228] sm:$0xff]
    %v209 = vld [vmem:[#allocation8 + $0x230] sm:$0xff]
    %v210 = vld [vmem:[#allocation8 + $0x238] sm:$0xff]
    %v211 = vld [vmem:[#allocation8 + $0x240] sm:$0xff]
    %v212 = vld [vmem:[#allocation8 + $0x248] sm:$0xff]
    %v213 = vld [vmem:[#allocation8 + $0x250] sm:$0xff]
    %v214 = vld [vmem:[#allocation8 + $0x258] sm:$0xff]
    %v215 = vld [vmem:[#allocation8 + $0x260] sm:$0xff]
    %v216 = vld [vmem:[#allocation8 + $0x268] sm:$0xff]
    %v217 = vld [vmem:[#allocation8 + $0x270] sm:$0xff]
    %v218 = vld [vmem:[#allocation8 + $0x278] sm:$0xff]
    %v219 = vld [vmem:[#allocation8 + $0x280] sm:$0xff]
    %v220 = vld [vmem:[#allocation8 + $0x288] sm:$0xff]
    %v221 = vld [vmem:[#allocation8 + $0x290] sm:$0xff]
    %v222 = vld [vmem:[#allocation8 + $0x298] sm:$0xff]
    %v223 = vld [vmem:[#allocation8 + $0x2a0] sm:$0xff]
    %v224 = vld [vmem:[#allocation8 + $0x2a8] sm:$0xff]
    %v225 = vld [vmem:[#allocation8 + $0x2b0] sm:$0xff]
    %v226 = vld [vmem:[#allocation8 + $0x2b8] sm:$0xff]
    %v227 = vld [vmem:[#allocation8 + $0x2c0] sm:$0xff]
    %v228 = vld [vmem:[#allocation8 + $0x2c8] sm:$0xff]
    %v229 = vld [vmem:[#allocation8 + $0x2d0] sm:$0xff]
    %v230 = vld [vmem:[#allocation8 + $0x2d8] sm:$0xff]
    %v231 = vld [vmem:[#allocation8 + $0x2e0] sm:$0xff]
    %v232 = vld [vmem:[#allocation8 + $0x2e8] sm:$0xff]
    %v233 = vld [vmem:[#allocation8 + $0x2f0] sm:$0xff]
    %v234 = vld [vmem:[#allocation8 + $0x2f8] sm:$0xff]
    %v235 = vld [vmem:[#allocation8 + $0x300] sm:$0xff]
    %v236 = vld [vmem:[#allocation8 + $0x308] sm:$0xff]
    %v237 = vld [vmem:[#allocation8 + $0x310] sm:$0xff]
    %v238 = vld [vmem:[#allocation8 + $0x318] sm:$0xff]
    %v239 = vld [vmem:[#allocation8 + $0x320] sm:$0xff]
    %v240 = vld [vmem:[#allocation8 + $0x328] sm:$0xff]
    %v241 = vld [vmem:[#allocation8 + $0x330] sm:$0xff]
    %v242 = vld [vmem:[#allocation8 + $0x338] sm:$0xff]
    %v243 = vld [vmem:[#allocation8 + $0x340] sm:$0xff]
    %v244 = vld [vmem:[#allocation8 + $0x348] sm:$0xff]
    %v245 = vld [vmem:[#allocation8 + $0x350] sm:$0xff]
    %v246 = vld [vmem:[#allocation8 + $0x358] sm:$0xff]
    %v247 = vld [vmem:[#allocation8 + $0x360] sm:$0xff]
    %v248 = vld [vmem:[#allocation8 + $0x368] sm:$0xff]
    %v249 = vld [vmem:[#allocation8 + $0x370] sm:$0xff]
    %v250 = vld [vmem:[#allocation8 + $0x378] sm:$0xff]
    %v251 = vld [vmem:[#allocation8 + $0x380] sm:$0xff]
    %v252 = vld [vmem:[#allocation8 + $0x388] sm:$0xff]
    %v253 = vld [vmem:[#allocation8 + $0x390] sm:$0xff]
    %v254 = vld [vmem:[#allocation8 + $0x398] sm:$0xff]
    %v255 = vld [vmem:[#allocation8 + $0x3a0] sm:$0xff]
    %v256 = vld [vmem:[#allocation8 + $0x3a8] sm:$0xff]
    %v257 = vld [vmem:[#allocation8 + $0x3b0] sm:$0xff]
    %v258 = vld [vmem:[#allocation8 + $0x3b8] sm:$0xff]
    %v259 = vld [vmem:[#allocation8 + $0x3c0] sm:$0xff]
    %v260 = vld [vmem:[#allocation8 + $0x3c8] sm:$0xff]
    %v261 = vld [vmem:[#allocation8 + $0x3d0] sm:$0xff]
    %v262 = vld [vmem:[#allocation8 + $0x3d8] sm:$0xff]
    %v263 = vld [vmem:[#allocation8 + $0x3e0] sm:$0xff]
    %v264 = vld [vmem:[#allocation8 + $0x3e8] sm:$0xff]
    %v265 = vld [vmem:[#allocation8 + $0x3f0] sm:$0xff]
    %v266 = vld [vmem:[#allocation8 + $0x3f8] sm:$0xff]
    %v267 = vld [vmem:[%s3] sm:$0xf]
    %v269 = vperm.slane %v267, 0
    %v270 = vperm.slane %v267, 1
    %v271 = vperm.slane %v267, 2
    %v272 = vperm.slane %v267, 3
    %v405 = vunpack.c.l.b16 %v139
    %v406 = vunpack.c.h.b16 %v139
    %v407 = vunpack.c.l.b16 %v140
    %v408 = vunpack.c.h.b16 %v140
    %v409 = vunpack.c.l.b16 %v141
    %v410 = vunpack.c.h.b16 %v141
    %v411 = vunpack.c.l.b16 %v142
    %v412 = vunpack.c.h.b16 %v142
    %v413 = vunpack.c.l.b16 %v143
    %v414 = vunpack.c.h.b16 %v143
    %v415 = vunpack.c.l.b16 %v144
    %v416 = vunpack.c.h.b16 %v144
    %v417 = vunpack.c.l.b16 %v145
    %v418 = vunpack.c.h.b16 %v145
    %v419 = vunpack.c.l.b16 %v146
    %v420 = vunpack.c.h.b16 %v146
    %v421 = vunpack.c.l.b16 %v147
    %v422 = vunpack.c.h.b16 %v147
    %v423 = vunpack.c.l.b16 %v148
    %v424 = vunpack.c.h.b16 %v148
    %v425 = vunpack.c.l.b16 %v149
    %v426 = vunpack.c.h.b16 %v149
    %v427 = vunpack.c.l.b16 %v150
    %v428 = vunpack.c.h.b16 %v150
    %v429 = vunpack.c.l.b16 %v151
    %v430 = vunpack.c.h.b16 %v151
    %v431 = vunpack.c.l.b16 %v152
    %v432 = vunpack.c.h.b16 %v152
    %v433 = vunpack.c.l.b16 %v153
    %v434 = vunpack.c.h.b16 %v153
    %v435 = vunpack.c.l.b16 %v154
    %v436 = vunpack.c.h.b16 %v154
    %v437 = vunpack.c.l.b16 %v155
    %v438 = vunpack.c.h.b16 %v155
    %v439 = vunpack.c.l.b16 %v156
    %v440 = vunpack.c.h.b16 %v156
    %v441 = vunpack.c.l.b16 %v157
    %v442 = vunpack.c.h.b16 %v157
    %v443 = vunpack.c.l.b16 %v158
    %v444 = vunpack.c.h.b16 %v158
    %v445 = vunpack.c.l.b16 %v159
    %v446 = vunpack.c.h.b16 %v159
    %v447 = vunpack.c.l.b16 %v160
    %v448 = vunpack.c.h.b16 %v160
    %v449 = vunpack.c.l.b16 %v161
    %v450 = vunpack.c.h.b16 %v161
    %v451 = vunpack.c.l.b16 %v162
    %v452 = vunpack.c.h.b16 %v162
    %v453 = vunpack.c.l.b16 %v163
    %v454 = vunpack.c.h.b16 %v163
    %v455 = vunpack.c.l.b16 %v164
    %v456 = vunpack.c.h.b16 %v164
    %v457 = vunpack.c.l.b16 %v165
    %v458 = vunpack.c.h.b16 %v165
    %v459 = vunpack.c.l.b16 %v166
    %v460 = vunpack.c.h.b16 %v166
    %v461 = vunpack.c.l.b16 %v167
    %v462 = vunpack.c.h.b16 %v167
    %v463 = vunpack.c.l.b16 %v168
    %v464 = vunpack.c.h.b16 %v168
    %v465 = vunpack.c.l.b16 %v169
    %v466 = vunpack.c.h.b16 %v169
    %v467 = vunpack.c.l.b16 %v170
    %v468 = vunpack.c.h.b16 %v170
    %v469 = vunpack.c.l.b16 %v171
    %v470 = vunpack.c.h.b16 %v171
    %v471 = vunpack.c.l.b16 %v172
    %v472 = vunpack.c.h.b16 %v172
    %v473 = vunpack.c.l.b16 %v173
    %v474 = vunpack.c.h.b16 %v173
    %v475 = vunpack.c.l.b16 %v174
    %v476 = vunpack.c.h.b16 %v174
    %v477 = vunpack.c.l.b16 %v175
    %v478 = vunpack.c.h.b16 %v175
    %v479 = vunpack.c.l.b16 %v176
    %v480 = vunpack.c.h.b16 %v176
    %v481 = vunpack.c.l.b16 %v177
    %v482 = vunpack.c.h.b16 %v177
    %v483 = vunpack.c.l.b16 %v178
    %v484 = vunpack.c.h.b16 %v178
    %v485 = vunpack.c.l.b16 %v179
    %v486 = vunpack.c.h.b16 %v179
    %v487 = vunpack.c.l.b16 %v180
    %v488 = vunpack.c.h.b16 %v180
    %v489 = vunpack.c.l.b16 %v181
    %v490 = vunpack.c.h.b16 %v181
    %v491 = vunpack.c.l.b16 %v182
    %v492 = vunpack.c.h.b16 %v182
    %v493 = vunpack.c.l.b16 %v183
    %v494 = vunpack.c.h.b16 %v183
    %v495 = vunpack.c.l.b16 %v184
    %v496 = vunpack.c.h.b16 %v184
    %v497 = vunpack.c.l.b16 %v185
    %v498 = vunpack.c.h.b16 %v185
    %v499 = vunpack.c.l.b16 %v186
    %v500 = vunpack.c.h.b16 %v186
    %v501 = vunpack.c.l.b16 %v187
    %v502 = vunpack.c.h.b16 %v187
    %v503 = vunpack.c.l.b16 %v188
    %v504 = vunpack.c.h.b16 %v188
    %v505 = vunpack.c.l.b16 %v189
    %v506 = vunpack.c.h.b16 %v189
    %v507 = vunpack.c.l.b16 %v190
    %v508 = vunpack.c.h.b16 %v190
    %v509 = vunpack.c.l.b16 %v191
    %v510 = vunpack.c.h.b16 %v191
    %v511 = vunpack.c.l.b16 %v192
    %v512 = vunpack.c.h.b16 %v192
    %v513 = vunpack.c.l.b16 %v193
    %v514 = vunpack.c.h.b16 %v193
    %v515 = vunpack.c.l.b16 %v194
    %v516 = vunpack.c.h.b16 %v194
    %v517 = vunpack.c.l.b16 %v195
    %v518 = vunpack.c.h.b16 %v195
    %v519 = vunpack.c.l.b16 %v196
    %v520 = vunpack.c.h.b16 %v196
    %v521 = vunpack.c.l.b16 %v197
    %v522 = vunpack.c.h.b16 %v197
    %v523 = vunpack.c.l.b16 %v198
    %v524 = vunpack.c.h.b16 %v198
    %v525 = vunpack.c.l.b16 %v199
    %v526 = vunpack.c.h.b16 %v199
    %v527 = vunpack.c.l.b16 %v200
    %v528 = vunpack.c.h.b16 %v200
    %v529 = vunpack.c.l.b16 %v201
    %v530 = vunpack.c.h.b16 %v201
    %v531 = vunpack.c.l.b16 %v202
    %v532 = vunpack.c.h.b16 %v202
    %v533 = vunpack.c.l.b16 %v203
    %v534 = vunpack.c.h.b16 %v203
    %v535 = vunpack.c.l.b16 %v204
    %v536 = vunpack.c.h.b16 %v204
    %v537 = vunpack.c.l.b16 %v205
    %v538 = vunpack.c.h.b16 %v205
    %v539 = vunpack.c.l.b16 %v206
    %v540 = vunpack.c.h.b16 %v206
    %v541 = vunpack.c.l.b16 %v207
    %v542 = vunpack.c.h.b16 %v207
    %v543 = vunpack.c.l.b16 %v208
    %v544 = vunpack.c.h.b16 %v208
    %v545 = vunpack.c.l.b16 %v209
    %v546 = vunpack.c.h.b16 %v209
    %v547 = vunpack.c.l.b16 %v210
    %v548 = vunpack.c.h.b16 %v210
    %v549 = vunpack.c.l.b16 %v211
    %v550 = vunpack.c.h.b16 %v211
    %v551 = vunpack.c.l.b16 %v212
    %v552 = vunpack.c.h.b16 %v212
    %v553 = vunpack.c.l.b16 %v213
    %v554 = vunpack.c.h.b16 %v213
    %v555 = vunpack.c.l.b16 %v214
    %v556 = vunpack.c.h.b16 %v214
    %v557 = vunpack.c.l.b16 %v215
    %v558 = vunpack.c.h.b16 %v215
    %v559 = vunpack.c.l.b16 %v216
    %v560 = vunpack.c.h.b16 %v216
    %v561 = vunpack.c.l.b16 %v217
    %v562 = vunpack.c.h.b16 %v217
    %v563 = vunpack.c.l.b16 %v218
    %v564 = vunpack.c.h.b16 %v218
    %v565 = vunpack.c.l.b16 %v219
    %v566 = vunpack.c.h.b16 %v219
    %v567 = vunpack.c.l.b16 %v220
    %v568 = vunpack.c.h.b16 %v220
    %v569 = vunpack.c.l.b16 %v221
    %v570 = vunpack.c.h.b16 %v221
    %v571 = vunpack.c.l.b16 %v222
    %v572 = vunpack.c.h.b16 %v222
    %v573 = vunpack.c.l.b16 %v223
    %v574 = vunpack.c.h.b16 %v223
    %v575 = vunpack.c.l.b16 %v224
    %v576 = vunpack.c.h.b16 %v224
    %v577 = vunpack.c.l.b16 %v225
    %v578 = vunpack.c.h.b16 %v225
    %v579 = vunpack.c.l.b16 %v226
    %v580 = vunpack.c.h.b16 %v226
    %v581 = vunpack.c.l.b16 %v227
    %v582 = vunpack.c.h.b16 %v227
    %v583 = vunpack.c.l.b16 %v228
    %v584 = vunpack.c.h.b16 %v228
    %v585 = vunpack.c.l.b16 %v229
    %v586 = vunpack.c.h.b16 %v229
    %v587 = vunpack.c.l.b16 %v230
    %v588 = vunpack.c.h.b16 %v230
    %v589 = vunpack.c.l.b16 %v231
    %v590 = vunpack.c.h.b16 %v231
    %v591 = vunpack.c.l.b16 %v232
    %v592 = vunpack.c.h.b16 %v232
    %v593 = vunpack.c.l.b16 %v233
    %v594 = vunpack.c.h.b16 %v233
    %v595 = vunpack.c.l.b16 %v234
    %v596 = vunpack.c.h.b16 %v234
    %v597 = vunpack.c.l.b16 %v235
    %v598 = vunpack.c.h.b16 %v235
    %v599 = vunpack.c.l.b16 %v236
    %v600 = vunpack.c.h.b16 %v236
    %v601 = vunpack.c.l.b16 %v237
    %v602 = vunpack.c.h.b16 %v237
    %v603 = vunpack.c.l.b16 %v238
    %v604 = vunpack.c.h.b16 %v238
    %v605 = vunpack.c.l.b16 %v239
    %v606 = vunpack.c.h.b16 %v239
    %v607 = vunpack.c.l.b16 %v240
    %v608 = vunpack.c.h.b16 %v240
    %v609 = vunpack.c.l.b16 %v241
    %v610 = vunpack.c.h.b16 %v241
    %v611 = vunpack.c.l.b16 %v242
    %v612 = vunpack.c.h.b16 %v242
    %v613 = vunpack.c.l.b16 %v243
    %v614 = vunpack.c.h.b16 %v243
    %v615 = vunpack.c.l.b16 %v244
    %v616 = vunpack.c.h.b16 %v244
    %v617 = vunpack.c.l.b16 %v245
    %v618 = vunpack.c.h.b16 %v245
    %v619 = vunpack.c.l.b16 %v246
    %v620 = vunpack.c.h.b16 %v246
    %v621 = vunpack.c.l.b16 %v247
    %v622 = vunpack.c.h.b16 %v247
    %v623 = vunpack.c.l.b16 %v248
    %v624 = vunpack.c.h.b16 %v248
    %v625 = vunpack.c.l.b16 %v249
    %v626 = vunpack.c.h.b16 %v249
    %v627 = vunpack.c.l.b16 %v250
    %v628 = vunpack.c.h.b16 %v250
    %v629 = vunpack.c.l.b16 %v251
    %v630 = vunpack.c.h.b16 %v251
    %v631 = vunpack.c.l.b16 %v252
    %v632 = vunpack.c.h.b16 %v252
    %v633 = vunpack.c.l.b16 %v253
    %v634 = vunpack.c.h.b16 %v253
    %v635 = vunpack.c.l.b16 %v254
    %v636 = vunpack.c.h.b16 %v254
    %v637 = vunpack.c.l.b16 %v255
    %v638 = vunpack.c.h.b16 %v255
    %v639 = vunpack.c.l.b16 %v256
    %v640 = vunpack.c.h.b16 %v256
    %v641 = vunpack.c.l.b16 %v257
    %v642 = vunpack.c.h.b16 %v257
    %v643 = vunpack.c.l.b16 %v258
    %v644 = vunpack.c.h.b16 %v258
    %v645 = vunpack.c.l.b16 %v259
    %v646 = vunpack.c.h.b16 %v259
    %v647 = vunpack.c.l.b16 %v260
    %v648 = vunpack.c.h.b16 %v260
    %v649 = vunpack.c.l.b16 %v261
    %v650 = vunpack.c.h.b16 %v261
    %v651 = vunpack.c.l.b16 %v262
    %v652 = vunpack.c.h.b16 %v262
    %v653 = vunpack.c.l.b16 %v263
    %v654 = vunpack.c.h.b16 %v263
    %v655 = vunpack.c.l.b16 %v264
    %v656 = vunpack.c.h.b16 %v264
    %v657 = vunpack.c.l.b16 %v265
    %v658 = vunpack.c.h.b16 %v265
    %v659 = vunpack.c.l.b16 %v266
    %v660 = vunpack.c.h.b16 %v266
    %v661 = vpack.c.b16 %v409, %v405
    %v662 = vpack.c.b16 %v410, %v406
    %v663 = vpack.c.b16 %v411, %v407
    %v664 = vpack.c.b16 %v412, %v408
    %v665 = vpack.c.b16 %v417, %v413
    %v666 = vpack.c.b16 %v418, %v414
    %v667 = vpack.c.b16 %v419, %v415
    %v668 = vpack.c.b16 %v420, %v416
    %v669 = vpack.c.b16 %v425, %v421
    %v670 = vpack.c.b16 %v426, %v422
    %v671 = vpack.c.b16 %v427, %v423
    %v672 = vpack.c.b16 %v428, %v424
    %v673 = vpack.c.b16 %v433, %v429
    %v674 = vpack.c.b16 %v434, %v430
    %v675 = vpack.c.b16 %v435, %v431
    %v676 = vpack.c.b16 %v436, %v432
    %v677 = vpack.c.b16 %v441, %v437
    %v678 = vpack.c.b16 %v442, %v438
    %v679 = vpack.c.b16 %v443, %v439
    %v680 = vpack.c.b16 %v444, %v440
    %v681 = vpack.c.b16 %v449, %v445
    %v682 = vpack.c.b16 %v450, %v446
    %v683 = vpack.c.b16 %v451, %v447
    %v684 = vpack.c.b16 %v452, %v448
    %v685 = vpack.c.b16 %v457, %v453
    %v686 = vpack.c.b16 %v458, %v454
    %v687 = vpack.c.b16 %v459, %v455
    %v688 = vpack.c.b16 %v460, %v456
    %v689 = vpack.c.b16 %v465, %v461
    %v690 = vpack.c.b16 %v466, %v462
    %v691 = vpack.c.b16 %v467, %v463
    %v692 = vpack.c.b16 %v468, %v464
    %v693 = vpack.c.b16 %v473, %v469
    %v694 = vpack.c.b16 %v474, %v470
    %v695 = vpack.c.b16 %v475, %v471
    %v696 = vpack.c.b16 %v476, %v472
    %v697 = vpack.c.b16 %v481, %v477
    %v698 = vpack.c.b16 %v482, %v478
    %v699 = vpack.c.b16 %v483, %v479
    %v700 = vpack.c.b16 %v484, %v480
    %v701 = vpack.c.b16 %v489, %v485
    %v702 = vpack.c.b16 %v490, %v486
    %v703 = vpack.c.b16 %v491, %v487
    %v704 = vpack.c.b16 %v492, %v488
    %v705 = vpack.c.b16 %v497, %v493
    %v706 = vpack.c.b16 %v498, %v494
    %v707 = vpack.c.b16 %v499, %v495
    %v708 = vpack.c.b16 %v500, %v496
    %v709 = vpack.c.b16 %v505, %v501
    %v710 = vpack.c.b16 %v506, %v502
    %v711 = vpack.c.b16 %v507, %v503
    %v712 = vpack.c.b16 %v508, %v504
    %v713 = vpack.c.b16 %v513, %v509
    %v714 = vpack.c.b16 %v514, %v510
    %v715 = vpack.c.b16 %v515, %v511
    %v716 = vpack.c.b16 %v516, %v512
    %v717 = vpack.c.b16 %v521, %v517
    %v718 = vpack.c.b16 %v522, %v518
    %v719 = vpack.c.b16 %v523, %v519
    %v720 = vpack.c.b16 %v524, %v520
    %v721 = vpack.c.b16 %v529, %v525
    %v722 = vpack.c.b16 %v530, %v526
    %v723 = vpack.c.b16 %v531, %v527
    %v724 = vpack.c.b16 %v532, %v528
    %v725 = vpack.c.b16 %v537, %v533
    %v726 = vpack.c.b16 %v538, %v534
    %v727 = vpack.c.b16 %v539, %v535
    %v728 = vpack.c.b16 %v540, %v536
    %v729 = vpack.c.b16 %v545, %v541
    %v730 = vpack.c.b16 %v546, %v542
    %v731 = vpack.c.b16 %v547, %v543
    %v732 = vpack.c.b16 %v548, %v544
    %v733 = vpack.c.b16 %v553, %v549
    %v734 = vpack.c.b16 %v554, %v550
    %v735 = vpack.c.b16 %v555, %v551
    %v736 = vpack.c.b16 %v556, %v552
    %v737 = vpack.c.b16 %v561, %v557
    %v738 = vpack.c.b16 %v562, %v558
    %v739 = vpack.c.b16 %v563, %v559
    %v740 = vpack.c.b16 %v564, %v560
    %v741 = vpack.c.b16 %v569, %v565
    %v742 = vpack.c.b16 %v570, %v566
    %v743 = vpack.c.b16 %v571, %v567
    %v744 = vpack.c.b16 %v572, %v568
    %v745 = vpack.c.b16 %v577, %v573
    %v746 = vpack.c.b16 %v578, %v574
    %v747 = vpack.c.b16 %v579, %v575
    %v748 = vpack.c.b16 %v580, %v576
    %v749 = vpack.c.b16 %v585, %v581
    %v750 = vpack.c.b16 %v586, %v582
    %v751 = vpack.c.b16 %v587, %v583
    %v752 = vpack.c.b16 %v588, %v584
    %v753 = vpack.c.b16 %v593, %v589
    %v754 = vpack.c.b16 %v594, %v590
    %v755 = vpack.c.b16 %v595, %v591
    %v756 = vpack.c.b16 %v596, %v592
    %v757 = vpack.c.b16 %v601, %v597
    %v758 = vpack.c.b16 %v602, %v598
    %v759 = vpack.c.b16 %v603, %v599
    %v760 = vpack.c.b16 %v604, %v600
    %v761 = vpack.c.b16 %v609, %v605
    %v762 = vpack.c.b16 %v610, %v606
    %v763 = vpack.c.b16 %v611, %v607
    %v764 = vpack.c.b16 %v612, %v608
    %v765 = vpack.c.b16 %v617, %v613
    %v766 = vpack.c.b16 %v618, %v614
    %v767 = vpack.c.b16 %v619, %v615
    %v768 = vpack.c.b16 %v620, %v616
    %v769 = vpack.c.b16 %v625, %v621
    %v770 = vpack.c.b16 %v626, %v622
    %v771 = vpack.c.b16 %v627, %v623
    %v772 = vpack.c.b16 %v628, %v624
    %v773 = vpack.c.b16 %v633, %v629
    %v774 = vpack.c.b16 %v634, %v630
    %v775 = vpack.c.b16 %v635, %v631
    %v776 = vpack.c.b16 %v636, %v632
    %v777 = vpack.c.b16 %v641, %v637
    %v778 = vpack.c.b16 %v642, %v638
    %v779 = vpack.c.b16 %v643, %v639
    %v780 = vpack.c.b16 %v644, %v640
    %v781 = vpack.c.b16 %v649, %v645
    %v782 = vpack.c.b16 %v650, %v646
    %v783 = vpack.c.b16 %v651, %v647
    %v784 = vpack.c.b16 %v652, %v648
    %v785 = vpack.c.b16 %v657, %v653
    %v786 = vpack.c.b16 %v658, %v654
    %v787 = vpack.c.b16 %v659, %v655
    %v788 = vpack.c.b16 %v660, %v656
    %917 = vmatpush.bf16.msra.mxu0 %v689
    %918 = vmatpush.bf16.msra.mxu0 %v685
    %919 = vmatpush.bf16.msra.mxu0 %v681
    %920 = vmatpush.bf16.msra.mxu0 %v677
    %921 = vmatpush.bf16.msra.mxu0 %v673
    %922 = vmatpush.bf16.msra.mxu0 %v669
    %923 = vmatpush.bf16.msra.mxu0 %v665
    %924 = vmatpush.bf16.msra.mxu0 %v661
    %925 = vmatmul.bf16.gmra.mxu0 %v135
    %v926 = vpop.f32.mrf.mxu0
    %v927 = vadd.f32 %v269, %v926
    %v928 = vpop.f32.mrf.mxu0
    %929 = vdwg.mxu0
    %930 = vmatpush.bf16.msra.mxu0 %v721
    %931 = vmatpush.bf16.msra.mxu0 %v717
    %932 = vmatpush.bf16.msra.mxu0 %v713
    %933 = vmatpush.bf16.msra.mxu0 %v709
    %934 = vmatpush.bf16.msra.mxu0 %v705
    %935 = vmatpush.bf16.msra.mxu0 %v701
    %936 = vmatpush.bf16.msra.mxu0 %v697
    %937 = vmatpush.bf16.msra.mxu0 %v693
    %938 = vmatmul.bf16.gmra.mxu0 %v136
    %v939 = vpop.f32.mrf.mxu0
    %v940 = vadd.f32 %v927, %v939
    %v941 = vpop.f32.mrf.mxu0
    %942 = vdwg.mxu0
    %943 = vmatpush.bf16.msra.mxu0 %v753
    %944 = vmatpush.bf16.msra.mxu0 %v749
    %945 = vmatpush.bf16.msra.mxu0 %v745
    %946 = vmatpush.bf16.msra.mxu0 %v741
    %947 = vmatpush.bf16.msra.mxu0 %v737
    %948 = vmatpush.bf16.msra.mxu0 %v733
    %949 = vmatpush.bf16.msra.mxu0 %v729
    %950 = vmatpush.bf16.msra.mxu0 %v725
    %951 = vmatmul.bf16.gmra.mxu0 %v137
    %v952 = vpop.f32.mrf.mxu0
    %v953 = vadd.f32 %v940, %v952
    %v954 = vpop.f32.mrf.mxu0
    %955 = vdwg.mxu0
    %956 = vmatpush.bf16.msra.mxu0 %v785
    %957 = vmatpush.bf16.msra.mxu0 %v781
    %958 = vmatpush.bf16.msra.mxu0 %v777
    %959 = vmatpush.bf16.msra.mxu0 %v773
    %960 = vmatpush.bf16.msra.mxu0 %v769
    %961 = vmatpush.bf16.msra.mxu0 %v765
    %962 = vmatpush.bf16.msra.mxu0 %v761
    %963 = vmatpush.bf16.msra.mxu0 %v757
    %964 = vmatmul.bf16.gmra.mxu0 %v138
    %v965 = vpop.f32.mrf.mxu0
    %v966 = vadd.f32 %v953, %v965
    %v967 = vpop.f32.mrf.mxu0
    %968 = vdwg.mxu0
    %969 = vmatpush.bf16.msra.mxu0 %v690
    %970 = vmatpush.bf16.msra.mxu0 %v686
    %971 = vmatpush.bf16.msra.mxu0 %v682
    %972 = vmatpush.bf16.msra.mxu0 %v678
    %973 = vmatpush.bf16.msra.mxu0 %v674
    %974 = vmatpush.bf16.msra.mxu0 %v670
    %975 = vmatpush.bf16.msra.mxu0 %v666
    %976 = vmatpush.bf16.msra.mxu0 %v662
    %977 = vmatmul.bf16.gmra.mxu0 %v135
    %v978 = vpop.f32.mrf.mxu0
    %v979 = vadd.f32 %v270, %v978
    %v980 = vpop.f32.mrf.mxu0
    %981 = vdwg.mxu0
    %982 = vmatpush.bf16.msra.mxu0 %v722
    %983 = vmatpush.bf16.msra.mxu0 %v718
    %984 = vmatpush.bf16.msra.mxu0 %v714
    %985 = vmatpush.bf16.msra.mxu0 %v710
    %986 = vmatpush.bf16.msra.mxu0 %v706
    %987 = vmatpush.bf16.msra.mxu0 %v702
    %988 = vmatpush.bf16.msra.mxu0 %v698
    %989 = vmatpush.bf16.msra.mxu0 %v694
    %990 = vmatmul.bf16.gmra.mxu0 %v136
    %v991 = vpop.f32.mrf.mxu0
    %v992 = vadd.f32 %v979, %v991
    %v993 = vpop.f32.mrf.mxu0
    %994 = vdwg.mxu0
    %995 = vmatpush.bf16.msra.mxu0 %v754
    %996 = vmatpush.bf16.msra.mxu0 %v750
    %997 = vmatpush.bf16.msra.mxu0 %v746
    %998 = vmatpush.bf16.msra.mxu0 %v742
    %999 = vmatpush.bf16.msra.mxu0 %v738
    %1000 = vmatpush.bf16.msra.mxu0 %v734
    %1001 = vmatpush.bf16.msra.mxu0 %v730
    %1002 = vmatpush.bf16.msra.mxu0 %v726
    %1003 = vmatmul.bf16.gmra.mxu0 %v137
    %v1004 = vpop.f32.mrf.mxu0
    %v1005 = vadd.f32 %v992, %v1004
    %v1006 = vpop.f32.mrf.mxu0
    %1007 = vdwg.mxu0
    %1008 = vmatpush.bf16.msra.mxu0 %v786
    %1009 = vmatpush.bf16.msra.mxu0 %v782
    %1010 = vmatpush.bf16.msra.mxu0 %v778
    %1011 = vmatpush.bf16.msra.mxu0 %v774
    %1012 = vmatpush.bf16.msra.mxu0 %v770
    %1013 = vmatpush.bf16.msra.mxu0 %v766
    %1014 = vmatpush.bf16.msra.mxu0 %v762
    %1015 = vmatpush.bf16.msra.mxu0 %v758
    %1016 = vmatmul.bf16.gmra.mxu0 %v138
    %v1017 = vpop.f32.mrf.mxu0
    %v1018 = vadd.f32 %v1005, %v1017
    %v1019 = vpop.f32.mrf.mxu0
    %1020 = vdwg.mxu0
    %1021 = vmatpush.bf16.msra.mxu0 %v691
    %1022 = vmatpush.bf16.msra.mxu0 %v687
    %1023 = vmatpush.bf16.msra.mxu0 %v683
    %1024 = vmatpush.bf16.msra.mxu0 %v679
    %1025 = vmatpush.bf16.msra.mxu0 %v675
    %1026 = vmatpush.bf16.msra.mxu0 %v671
    %1027 = vmatpush.bf16.msra.mxu0 %v667
    %1028 = vmatpush.bf16.msra.mxu0 %v663
    %1029 = vmatmul.bf16.gmra.mxu0 %v135
    %v1030 = vpop.f32.mrf.mxu0
    %v1031 = vadd.f32 %v271, %v1030
    %v1032 = vpop.f32.mrf.mxu0
    %1033 = vdwg.mxu0
    %1034 = vmatpush.bf16.msra.mxu0 %v723
    %1035 = vmatpush.bf16.msra.mxu0 %v719
    %1036 = vmatpush.bf16.msra.mxu0 %v715
    %1037 = vmatpush.bf16.msra.mxu0 %v711
    %1038 = vmatpush.bf16.msra.mxu0 %v707
    %1039 = vmatpush.bf16.msra.mxu0 %v703
    %1040 = vmatpush.bf16.msra.mxu0 %v699
    %1041 = vmatpush.bf16.msra.mxu0 %v695
    %1042 = vmatmul.bf16.gmra.mxu0 %v136
    %v1043 = vpop.f32.mrf.mxu0
    %v1044 = vadd.f32 %v1031, %v1043
    %v1045 = vpop.f32.mrf.mxu0
    %1046 = vdwg.mxu0
    %1047 = vmatpush.bf16.msra.mxu0 %v755
    %1048 = vmatpush.bf16.msra.mxu0 %v751
    %1049 = vmatpush.bf16.msra.mxu0 %v747
    %1050 = vmatpush.bf16.msra.mxu0 %v743
    %1051 = vmatpush.bf16.msra.mxu0 %v739
    %1052 = vmatpush.bf16.msra.mxu0 %v735
    %1053 = vmatpush.bf16.msra.mxu0 %v731
    %1054 = vmatpush.bf16.msra.mxu0 %v727
    %1055 = vmatmul.bf16.gmra.mxu0 %v137
    %v1056 = vpop.f32.mrf.mxu0
    %v1057 = vadd.f32 %v1044, %v1056
    %v1058 = vpop.f32.mrf.mxu0
    %1059 = vdwg.mxu0
    %1060 = vmatpush.bf16.msra.mxu0 %v787
    %1061 = vmatpush.bf16.msra.mxu0 %v783
    %1062 = vmatpush.bf16.msra.mxu0 %v779
    %1063 = vmatpush.bf16.msra.mxu0 %v775
    %1064 = vmatpush.bf16.msra.mxu0 %v771
    %1065 = vmatpush.bf16.msra.mxu0 %v767
    %1066 = vmatpush.bf16.msra.mxu0 %v763
    %1067 = vmatpush.bf16.msra.mxu0 %v759
    %1068 = vmatmul.bf16.gmra.mxu0 %v138
    %v1069 = vpop.f32.mrf.mxu0
    %v1070 = vadd.f32 %v1057, %v1069
    %v1071 = vpop.f32.mrf.mxu0
    %1072 = vdwg.mxu0
    %1073 = vmatpush.bf16.msra.mxu0 %v692
    %1074 = vmatpush.bf16.msra.mxu0 %v688
    %1075 = vmatpush.bf16.msra.mxu0 %v684
    %1076 = vmatpush.bf16.msra.mxu0 %v680
    %1077 = vmatpush.bf16.msra.mxu0 %v676
    %1078 = vmatpush.bf16.msra.mxu0 %v672
    %1079 = vmatpush.bf16.msra.mxu0 %v668
    %1080 = vmatpush.bf16.msra.mxu0 %v664
    %1081 = vmatmul.bf16.gmra.mxu0 %v135
    %v1082 = vpop.f32.mrf.mxu0
    %v1083 = vadd.f32 %v272, %v1082
    %v1084 = vpop.f32.mrf.mxu0
    %1085 = vdwg.mxu0
    %1086 = vmatpush.bf16.msra.mxu0 %v724
    %1087 = vmatpush.bf16.msra.mxu0 %v720
    %1088 = vmatpush.bf16.msra.mxu0 %v716
    %1089 = vmatpush.bf16.msra.mxu0 %v712
    %1090 = vmatpush.bf16.msra.mxu0 %v708
    %1091 = vmatpush.bf16.msra.mxu0 %v704
    %1092 = vmatpush.bf16.msra.mxu0 %v700
    %1093 = vmatpush.bf16.msra.mxu0 %v696
    %1094 = vmatmul.bf16.gmra.mxu0 %v136
    %v1095 = vpop.f32.mrf.mxu0
    %v1096 = vadd.f32 %v1083, %v1095
    %v1097 = vpop.f32.mrf.mxu0
    %1098 = vdwg.mxu0
    %1099 = vmatpush.bf16.msra.mxu0 %v756
    %1100 = vmatpush.bf16.msra.mxu0 %v752
    %1101 = vmatpush.bf16.msra.mxu0 %v748
    %1102 = vmatpush.bf16.msra.mxu0 %v744
    %1103 = vmatpush.bf16.msra.mxu0 %v740
    %1104 = vmatpush.bf16.msra.mxu0 %v736
    %1105 = vmatpush.bf16.msra.mxu0 %v732
    %1106 = vmatpush.bf16.msra.mxu0 %v728
    %1107 = vmatmul.bf16.gmra.mxu0 %v137
    %v1108 = vpop.f32.mrf.mxu0
    %v1109 = vadd.f32 %v1096, %v1108
    %v1110 = vpop.f32.mrf.mxu0
    %1111 = vdwg.mxu0
    %1112 = vmatpush.bf16.msra.mxu0 %v788
    %1113 = vmatpush.bf16.msra.mxu0 %v784
    %1114 = vmatpush.bf16.msra.mxu0 %v780
    %1115 = vmatpush.bf16.msra.mxu0 %v776
    %1116 = vmatpush.bf16.msra.mxu0 %v772
    %1117 = vmatpush.bf16.msra.mxu0 %v768
    %1118 = vmatpush.bf16.msra.mxu0 %v764
    %1119 = vmatpush.bf16.msra.mxu0 %v760
    %1120 = vmatmul.bf16.gmra.mxu0 %v138
    %v1121 = vpop.f32.mrf.mxu0
    %v1122 = vadd.f32 %v1109, %v1121
    %v1123 = vpop.f32.mrf.mxu0
    %1124 = vdwg.mxu0
    %v1125 = vmul.f32 %v966, %v966
    %v1126 = vmul.f32 %v1018, %v1018
    %v1127 = vmul.f32 %v1070, %v1070
    %v1128 = vmul.f32 %v1122, %v1122
    %vm1129 = vcmask 1041408
    %v1130 = vsel %vm1129, %v1125, 0.0
    %v1131 = vsel %vm1129, %v1126, 0.0
    %v1132 = vadd.f32 %v1130, %v1131
    %v1133 = vsel %vm1129, %v1127, 0.0
    %v1134 = vadd.f32 %v1132, %v1133
    %v1135 = vsel %vm1129, %v1128, 0.0
    %v1136 = vadd.f32 %v1134, %v1135
    %1137 = vadd.xlane.f32.xlu0 %v1136
    %v1138 = vpop.xlane.xlu0 %1137
    %v1139 = vrsqrt.pop %v1138
    %v1140 = vmul.f32 %v1139, %v1138
    %v1141 = vmul.f32 %v1140, %v1139
    %v1142 = vmul.f32 0.5, %v1141
    %v1143 = vsub.f32 1.5, %v1142
    %v1144 = vmul.f32 %v1139, %v1143
    %vm1145 = vweird.f32 %v1138
    %vm1146 = vweird.f32 %v1139
    %vm1147 = vmor %vm1145, %vm1146
    %v1148 = vsel %vm1147, %v1139, %v1144
    %v1149 = vmul.f32 %v966, %v1148
    %v1150 = vmul.f32 %v1018, %v1148
    %v1151 = vmul.f32 %v1070, %v1148
    %v1152 = vmul.f32 %v1122, %v1148
    %v1157 = vrot.slane %v1150, 6
    %v1158 = vrot.slane %v1151, 4
    %v1159 = vrot.slane %v1152, 2
    %v1160 = vsel %vm1129, %v1149, %v1157
    %vm1161 = vcmask 1045508
    %v1162 = vsel %vm1161, %v1158, %v1159
    %vm1163 = vcmask 1043456
    %v1164 = vsel %vm1163, %v1160, %v1162
    %1166 = vst [vmem:[#allocation17] sm:$0xff] %v1164
    %v1167 = vld [vmem:[#allocation6] sm:$0xff]
    %v1168 = vld [vmem:[#allocation6 + $0x8] sm:$0xff]
    %v1169 = vld [vmem:[#allocation6 + $0x10] sm:$0xff]
    %v1170 = vld [vmem:[#allocation6 + $0x18] sm:$0xff]
    %v1171 = vld [vmem:[#allocation6 + $0x20] sm:$0xff]
    %v1172 = vld [vmem:[#allocation6 + $0x28] sm:$0xff]
    %v1173 = vld [vmem:[#allocation6 + $0x30] sm:$0xff]
    %v1174 = vld [vmem:[#allocation6 + $0x38] sm:$0xff]
    %v1175 = vrot.slane %v1150, 7
    %v1176 = vrot.slane %v1151, 6
    %v1177 = vrot.slane %v1152, 5
    %vm1178 = vcmask 1040384
    %v1179 = vsel %vm1178, %v1149, %v1175
    %vm1180 = vcmask 1042434
    %v1181 = vsel %vm1180, %v1176, %v1177
    %v1182 = vsel %vm1129, %v1179, %v1181
    %vm1183 = vcmask 1041409
    %v1184 = vsel %vm1183, %v1149, %v1175
    %vm1185 = vcmask 1043459
    %v1186 = vsel %vm1185, %v1176, %v1177
    %vm1187 = vcmask 1042433
    %v1188 = vsel %vm1187, %v1184, %v1186
    %v1189 = vrot.slane %v1188, 1
    %v1190 = vperm.slane %v1182, 0
    %v1191 = vperm.slane %v1182, 1
    %v1192 = vperm.slane %v1182, 2
    %v1193 = vperm.slane %v1182, 3
    %v1194 = vperm.slane %v1189, 0
    %v1195 = vperm.slane %v1189, 1
    %v1196 = vperm.slane %v1189, 2
    %v1197 = vperm.slane %v1189, 3
    %v1206 = vmul.f32 %v1167, %v1190
    %v1207 = vmul.f32 %v1168, %v1191
    %v1208 = vmul.f32 %v1169, %v1192
    %v1209 = vmul.f32 %v1170, %v1193
    %v1210 = vmul.f32 %v1171, %v1194
    %v1211 = vmul.f32 %v1172, %v1195
    %v1212 = vmul.f32 %v1173, %v1196
    %v1213 = vmul.f32 %v1174, %v1197
    %v1214 = vadd.f32 %v1206, %v1207
    %v1215 = vadd.f32 %v1214, %v1208
    %v1216 = vadd.f32 %v1215, %v1209
    %1217 = vadd.xlane.f32.xlu0 %v1216
    %v1218 = vpop.xlane.xlu0 %1217
    %v1219 = vadd.f32 %v1210, %v1211
    %v1220 = vadd.f32 %v1219, %v1212
    %v1221 = vadd.f32 %v1220, %v1213
    %1222 = vadd.xlane.f32.xlu0 %v1221
    %v1223 = vpop.xlane.xlu0 %1222
    %v1224 = vadd.f32 %v1218, 1.0
    %v1225 = vadd.f32 %v1223, 1.0
    %v1226 = vmul.f32 %v1224, 0.5
    %v1227 = vmul.f32 %v1225, 0.5
    %v1228 = vmax.f32 %v1226, 1e-06
    %v1229 = vmax.f32 %v1227, 1e-06
    %v1230 = vmin.f32 %v1228, 0.999999
    %v1231 = vmin.f32 %v1229, 0.999999
    %v1234 = vlaneseq
    %v1235 = vand.u32 %v1234, 127
    %v1236 = vperm.slane %v1230, %v1235
    %v1237 = vperm.slane %v1231, %v1235
    %v1238 = vsel %vm1183, %v1237, %v1236
    %vm1240 = vcmask 58368
    %1241 = vst.msk [vmem:[#allocation14] sm:$0x3] %vm1240, %v1238
    %v1242 = vpack.c.bf16 %v1149, %v1149
    %v1243 = vpack.c.bf16 %v1150, %v1150
    %v1244 = vpack.c.bf16 %v1151, %v1151
    %v1245 = vpack.c.bf16 %v1152, %v1152
    %v1246 = vld [vmem:[#allocation9] sm:$0xff]
    %v1247 = vld [vmem:[#allocation9 + $0x8] sm:$0xff]
    %v1248 = vld [vmem:[#allocation9 + $0x10] sm:$0xff]
    %v1249 = vld [vmem:[#allocation9 + $0x18] sm:$0xff]
    %v1250 = vld [vmem:[#allocation9 + $0x20] sm:$0xff]
    %v1251 = vld [vmem:[#allocation9 + $0x28] sm:$0xff]
    %v1252 = vld [vmem:[#allocation9 + $0x30] sm:$0xff]
    %v1253 = vld [vmem:[#allocation9 + $0x38] sm:$0xff]
    %v1254 = vld [vmem:[#allocation9 + $0x40] sm:$0xff]
    %v1255 = vld [vmem:[#allocation9 + $0x48] sm:$0xff]
    %v1256 = vld [vmem:[#allocation9 + $0x50] sm:$0xff]
    %v1257 = vld [vmem:[#allocation9 + $0x58] sm:$0xff]
    %v1258 = vld [vmem:[#allocation9 + $0x60] sm:$0xff]
    %v1259 = vld [vmem:[#allocation9 + $0x68] sm:$0xff]
    %v1260 = vld [vmem:[#allocation9 + $0x70] sm:$0xff]
    %v1261 = vld [vmem:[#allocation9 + $0x78] sm:$0xff]
    %v1262 = vld [vmem:[#allocation9 + $0x80] sm:$0xff]
    %v1263 = vld [vmem:[#allocation9 + $0x88] sm:$0xff]
    %v1264 = vld [vmem:[#allocation9 + $0x90] sm:$0xff]
    %v1265 = vld [vmem:[#allocation9 + $0x98] sm:$0xff]
    %v1266 = vld [vmem:[#allocation9 + $0xa0] sm:$0xff]
    %v1267 = vld [vmem:[#allocation9 + $0xa8] sm:$0xff]
    %v1268 = vld [vmem:[#allocation9 + $0xb0] sm:$0xff]
    %v1269 = vld [vmem:[#allocation9 + $0xb8] sm:$0xff]
    %v1270 = vld [vmem:[#allocation9 + $0xc0] sm:$0xff]
    %v1271 = vld [vmem:[#allocation9 + $0xc8] sm:$0xff]
    %v1272 = vld [vmem:[#allocation9 + $0xd0] sm:$0xff]
    %v1273 = vld [vmem:[#allocation9 + $0xd8] sm:$0xff]
    %v1274 = vld [vmem:[#allocation9 + $0xe0] sm:$0xff]
    %v1275 = vld [vmem:[#allocation9 + $0xe8] sm:$0xff]
    %v1276 = vld [vmem:[#allocation9 + $0xf0] sm:$0xff]
    %v1277 = vld [vmem:[#allocation9 + $0xf8] sm:$0xff]
    %v1278 = vld [vmem:[#allocation9 + $0x100] sm:$0xff]
    %v1279 = vld [vmem:[#allocation9 + $0x108] sm:$0xff]
    %v1280 = vld [vmem:[#allocation9 + $0x110] sm:$0xff]
    %v1281 = vld [vmem:[#allocation9 + $0x118] sm:$0xff]
    %v1282 = vld [vmem:[#allocation9 + $0x120] sm:$0xff]
    %v1283 = vld [vmem:[#allocation9 + $0x128] sm:$0xff]
    %v1284 = vld [vmem:[#allocation9 + $0x130] sm:$0xff]
    %v1285 = vld [vmem:[#allocation9 + $0x138] sm:$0xff]
    %v1286 = vld [vmem:[#allocation9 + $0x140] sm:$0xff]
    %v1287 = vld [vmem:[#allocation9 + $0x148] sm:$0xff]
    %v1288 = vld [vmem:[#allocation9 + $0x150] sm:$0xff]
    %v1289 = vld [vmem:[#allocation9 + $0x158] sm:$0xff]
    %v1290 = vld [vmem:[#allocation9 + $0x160] sm:$0xff]
    %v1291 = vld [vmem:[#allocation9 + $0x168] sm:$0xff]
    %v1292 = vld [vmem:[#allocation9 + $0x170] sm:$0xff]
    %v1293 = vld [vmem:[#allocation9 + $0x178] sm:$0xff]
    %v1294 = vld [vmem:[#allocation9 + $0x180] sm:$0xff]
    %v1295 = vld [vmem:[#allocation9 + $0x188] sm:$0xff]
    %v1296 = vld [vmem:[#allocation9 + $0x190] sm:$0xff]
    %v1297 = vld [vmem:[#allocation9 + $0x198] sm:$0xff]
    %v1298 = vld [vmem:[#allocation9 + $0x1a0] sm:$0xff]
    %v1299 = vld [vmem:[#allocation9 + $0x1a8] sm:$0xff]
    %v1300 = vld [vmem:[#allocation9 + $0x1b0] sm:$0xff]
    %v1301 = vld [vmem:[#allocation9 + $0x1b8] sm:$0xff]
    %v1302 = vld [vmem:[#allocation9 + $0x1c0] sm:$0xff]
    %v1303 = vld [vmem:[#allocation9 + $0x1c8] sm:$0xff]
    %v1304 = vld [vmem:[#allocation9 + $0x1d0] sm:$0xff]
    %v1305 = vld [vmem:[#allocation9 + $0x1d8] sm:$0xff]
    %v1306 = vld [vmem:[#allocation9 + $0x1e0] sm:$0xff]
    %v1307 = vld [vmem:[#allocation9 + $0x1e8] sm:$0xff]
    %v1308 = vld [vmem:[#allocation9 + $0x1f0] sm:$0xff]
    %v1309 = vld [vmem:[#allocation9 + $0x1f8] sm:$0xff]
    %v1310 = vld [vmem:[#allocation9 + $0x200] sm:$0xff]
    %v1311 = vld [vmem:[#allocation9 + $0x208] sm:$0xff]
    %v1312 = vld [vmem:[#allocation9 + $0x210] sm:$0xff]
    %v1313 = vld [vmem:[#allocation9 + $0x218] sm:$0xff]
    %v1314 = vld [vmem:[#allocation9 + $0x220] sm:$0xff]
    %v1315 = vld [vmem:[#allocation9 + $0x228] sm:$0xff]
    %v1316 = vld [vmem:[#allocation9 + $0x230] sm:$0xff]
    %v1317 = vld [vmem:[#allocation9 + $0x238] sm:$0xff]
    %v1318 = vld [vmem:[#allocation9 + $0x240] sm:$0xff]
    %v1319 = vld [vmem:[#allocation9 + $0x248] sm:$0xff]
    %v1320 = vld [vmem:[#allocation9 + $0x250] sm:$0xff]
    %v1321 = vld [vmem:[#allocation9 + $0x258] sm:$0xff]
    %v1322 = vld [vmem:[#allocation9 + $0x260] sm:$0xff]
    %v1323 = vld [vmem:[#allocation9 + $0x268] sm:$0xff]
    %v1324 = vld [vmem:[#allocation9 + $0x270] sm:$0xff]
    %v1325 = vld [vmem:[#allocation9 + $0x278] sm:$0xff]
    %v1326 = vld [vmem:[#allocation9 + $0x280] sm:$0xff]
    %v1327 = vld [vmem:[#allocation9 + $0x288] sm:$0xff]
    %v1328 = vld [vmem:[#allocation9 + $0x290] sm:$0xff]
    %v1329 = vld [vmem:[#allocation9 + $0x298] sm:$0xff]
    %v1330 = vld [vmem:[#allocation9 + $0x2a0] sm:$0xff]
    %v1331 = vld [vmem:[#allocation9 + $0x2a8] sm:$0xff]
    %v1332 = vld [vmem:[#allocation9 + $0x2b0] sm:$0xff]
    %v1333 = vld [vmem:[#allocation9 + $0x2b8] sm:$0xff]
    %v1334 = vld [vmem:[#allocation9 + $0x2c0] sm:$0xff]
    %v1335 = vld [vmem:[#allocation9 + $0x2c8] sm:$0xff]
    %v1336 = vld [vmem:[#allocation9 + $0x2d0] sm:$0xff]
    %v1337 = vld [vmem:[#allocation9 + $0x2d8] sm:$0xff]
    %v1338 = vld [vmem:[#allocation9 + $0x2e0] sm:$0xff]
    %v1339 = vld [vmem:[#allocation9 + $0x2e8] sm:$0xff]
    %v1340 = vld [vmem:[#allocation9 + $0x2f0] sm:$0xff]
    %v1341 = vld [vmem:[#allocation9 + $0x2f8] sm:$0xff]
    %v1342 = vld [vmem:[#allocation9 + $0x300] sm:$0xff]
    %v1343 = vld [vmem:[#allocation9 + $0x308] sm:$0xff]
    %v1344 = vld [vmem:[#allocation9 + $0x310] sm:$0xff]
    %v1345 = vld [vmem:[#allocation9 + $0x318] sm:$0xff]
    %v1346 = vld [vmem:[#allocation9 + $0x320] sm:$0xff]
    %v1347 = vld [vmem:[#allocation9 + $0x328] sm:$0xff]
    %v1348 = vld [vmem:[#allocation9 + $0x330] sm:$0xff]
    %v1349 = vld [vmem:[#allocation9 + $0x338] sm:$0xff]
    %v1350 = vld [vmem:[#allocation9 + $0x340] sm:$0xff]
    %v1351 = vld [vmem:[#allocation9 + $0x348] sm:$0xff]
    %v1352 = vld [vmem:[#allocation9 + $0x350] sm:$0xff]
    %v1353 = vld [vmem:[#allocation9 + $0x358] sm:$0xff]
    %v1354 = vld [vmem:[#allocation9 + $0x360] sm:$0xff]
    %v1355 = vld [vmem:[#allocation9 + $0x368] sm:$0xff]
    %v1356 = vld [vmem:[#allocation9 + $0x370] sm:$0xff]
    %v1357 = vld [vmem:[#allocation9 + $0x378] sm:$0xff]
    %v1358 = vld [vmem:[#allocation9 + $0x380] sm:$0xff]
    %v1359 = vld [vmem:[#allocation9 + $0x388] sm:$0xff]
    %v1360 = vld [vmem:[#allocation9 + $0x390] sm:$0xff]
    %v1361 = vld [vmem:[#allocation9 + $0x398] sm:$0xff]
    %v1362 = vld [vmem:[#allocation9 + $0x3a0] sm:$0xff]
    %v1363 = vld [vmem:[#allocation9 + $0x3a8] sm:$0xff]
    %v1364 = vld [vmem:[#allocation9 + $0x3b0] sm:$0xff]
    %v1365 = vld [vmem:[#allocation9 + $0x3b8] sm:$0xff]
    %v1366 = vld [vmem:[#allocation9 + $0x3c0] sm:$0xff]
    %v1367 = vld [vmem:[#allocation9 + $0x3c8] sm:$0xff]
    %v1368 = vld [vmem:[#allocation9 + $0x3d0] sm:$0xff]
    %v1369 = vld [vmem:[#allocation9 + $0x3d8] sm:$0xff]
    %v1370 = vld [vmem:[#allocation9 + $0x3e0] sm:$0xff]
    %v1371 = vld [vmem:[#allocation9 + $0x3e8] sm:$0xff]
    %v1372 = vld [vmem:[#allocation9 + $0x3f0] sm:$0xff]
    %v1373 = vld [vmem:[#allocation9 + $0x3f8] sm:$0xff]
    %v1374 = vld [vmem:[#allocation11] sm:$0xf]
    %v1376 = vperm.slane %v1374, 0
    %v1377 = vperm.slane %v1374, 1
    %v1378 = vperm.slane %v1374, 2
    %v1379 = vperm.slane %v1374, 3
    %v1512 = vunpack.c.l.b16 %v1246
    %v1513 = vunpack.c.h.b16 %v1246
    %v1514 = vunpack.c.l.b16 %v1247
    %v1515 = vunpack.c.h.b16 %v1247
    %v1516 = vunpack.c.l.b16 %v1248
    %v1517 = vunpack.c.h.b16 %v1248
    %v1518 = vunpack.c.l.b16 %v1249
    %v1519 = vunpack.c.h.b16 %v1249
    %v1520 = vunpack.c.l.b16 %v1250
    %v1521 = vunpack.c.h.b16 %v1250
    %v1522 = vunpack.c.l.b16 %v1251
    %v1523 = vunpack.c.h.b16 %v1251
    %v1524 = vunpack.c.l.b16 %v1252
    %v1525 = vunpack.c.h.b16 %v1252
    %v1526 = vunpack.c.l.b16 %v1253
    %v1527 = vunpack.c.h.b16 %v1253
    %v1528 = vunpack.c.l.b16 %v1254
    %v1529 = vunpack.c.h.b16 %v1254
    %v1530 = vunpack.c.l.b16 %v1255
    %v1531 = vunpack.c.h.b16 %v1255
    %v1532 = vunpack.c.l.b16 %v1256
    %v1533 = vunpack.c.h.b16 %v1256
    %v1534 = vunpack.c.l.b16 %v1257
    %v1535 = vunpack.c.h.b16 %v1257
    %v1536 = vunpack.c.l.b16 %v1258
    %v1537 = vunpack.c.h.b16 %v1258
    %v1538 = vunpack.c.l.b16 %v1259
    %v1539 = vunpack.c.h.b16 %v1259
    %v1540 = vunpack.c.l.b16 %v1260
    %v1541 = vunpack.c.h.b16 %v1260
    %v1542 = vunpack.c.l.b16 %v1261
    %v1543 = vunpack.c.h.b16 %v1261
    %v1544 = vunpack.c.l.b16 %v1262
    %v1545 = vunpack.c.h.b16 %v1262
    %v1546 = vunpack.c.l.b16 %v1263
    %v1547 = vunpack.c.h.b16 %v1263
    %v1548 = vunpack.c.l.b16 %v1264
    %v1549 = vunpack.c.h.b16 %v1264
    %v1550 = vunpack.c.l.b16 %v1265
    %v1551 = vunpack.c.h.b16 %v1265
    %v1552 = vunpack.c.l.b16 %v1266
    %v1553 = vunpack.c.h.b16 %v1266
    %v1554 = vunpack.c.l.b16 %v1267
    %v1555 = vunpack.c.h.b16 %v1267
    %v1556 = vunpack.c.l.b16 %v1268
    %v1557 = vunpack.c.h.b16 %v1268
    %v1558 = vunpack.c.l.b16 %v1269
    %v1559 = vunpack.c.h.b16 %v1269
    %v1560 = vunpack.c.l.b16 %v1270
    %v1561 = vunpack.c.h.b16 %v1270
    %v1562 = vunpack.c.l.b16 %v1271
    %v1563 = vunpack.c.h.b16 %v1271
    %v1564 = vunpack.c.l.b16 %v1272
    %v1565 = vunpack.c.h.b16 %v1272
    %v1566 = vunpack.c.l.b16 %v1273
    %v1567 = vunpack.c.h.b16 %v1273
    %v1568 = vunpack.c.l.b16 %v1274
    %v1569 = vunpack.c.h.b16 %v1274
    %v1570 = vunpack.c.l.b16 %v1275
    %v1571 = vunpack.c.h.b16 %v1275
    %v1572 = vunpack.c.l.b16 %v1276
    %v1573 = vunpack.c.h.b16 %v1276
    %v1574 = vunpack.c.l.b16 %v1277
    %v1575 = vunpack.c.h.b16 %v1277
    %v1576 = vunpack.c.l.b16 %v1278
    %v1577 = vunpack.c.h.b16 %v1278
    %v1578 = vunpack.c.l.b16 %v1279
    %v1579 = vunpack.c.h.b16 %v1279
    %v1580 = vunpack.c.l.b16 %v1280
    %v1581 = vunpack.c.h.b16 %v1280
    %v1582 = vunpack.c.l.b16 %v1281
    %v1583 = vunpack.c.h.b16 %v1281
    %v1584 = vunpack.c.l.b16 %v1282
    %v1585 = vunpack.c.h.b16 %v1282
    %v1586 = vunpack.c.l.b16 %v1283
    %v1587 = vunpack.c.h.b16 %v1283
    %v1588 = vunpack.c.l.b16 %v1284
    %v1589 = vunpack.c.h.b16 %v1284
    %v1590 = vunpack.c.l.b16 %v1285
    %v1591 = vunpack.c.h.b16 %v1285
    %v1592 = vunpack.c.l.b16 %v1286
    %v1593 = vunpack.c.h.b16 %v1286
    %v1594 = vunpack.c.l.b16 %v1287
    %v1595 = vunpack.c.h.b16 %v1287
    %v1596 = vunpack.c.l.b16 %v1288
    %v1597 = vunpack.c.h.b16 %v1288
    %v1598 = vunpack.c.l.b16 %v1289
    %v1599 = vunpack.c.h.b16 %v1289
    %v1600 = vunpack.c.l.b16 %v1290
    %v1601 = vunpack.c.h.b16 %v1290
    %v1602 = vunpack.c.l.b16 %v1291
    %v1603 = vunpack.c.h.b16 %v1291
    %v1604 = vunpack.c.l.b16 %v1292
    %v1605 = vunpack.c.h.b16 %v1292
    %v1606 = vunpack.c.l.b16 %v1293
    %v1607 = vunpack.c.h.b16 %v1293
    %v1608 = vunpack.c.l.b16 %v1294
    %v1609 = vunpack.c.h.b16 %v1294
    %v1610 = vunpack.c.l.b16 %v1295
    %v1611 = vunpack.c.h.b16 %v1295
    %v1612 = vunpack.c.l.b16 %v1296
    %v1613 = vunpack.c.h.b16 %v1296
    %v1614 = vunpack.c.l.b16 %v1297
    %v1615 = vunpack.c.h.b16 %v1297
    %v1616 = vunpack.c.l.b16 %v1298
    %v1617 = vunpack.c.h.b16 %v1298
    %v1618 = vunpack.c.l.b16 %v1299
    %v1619 = vunpack.c.h.b16 %v1299
    %v1620 = vunpack.c.l.b16 %v1300
    %v1621 = vunpack.c.h.b16 %v1300
    %v1622 = vunpack.c.l.b16 %v1301
    %v1623 = vunpack.c.h.b16 %v1301
    %v1624 = vunpack.c.l.b16 %v1302
    %v1625 = vunpack.c.h.b16 %v1302
    %v1626 = vunpack.c.l.b16 %v1303
    %v1627 = vunpack.c.h.b16 %v1303
    %v1628 = vunpack.c.l.b16 %v1304
    %v1629 = vunpack.c.h.b16 %v1304
    %v1630 = vunpack.c.l.b16 %v1305
    %v1631 = vunpack.c.h.b16 %v1305
    %v1632 = vunpack.c.l.b16 %v1306
    %v1633 = vunpack.c.h.b16 %v1306
    %v1634 = vunpack.c.l.b16 %v1307
    %v1635 = vunpack.c.h.b16 %v1307
    %v1636 = vunpack.c.l.b16 %v1308
    %v1637 = vunpack.c.h.b16 %v1308
    %v1638 = vunpack.c.l.b16 %v1309
    %v1639 = vunpack.c.h.b16 %v1309
    %v1640 = vunpack.c.l.b16 %v1310
    %v1641 = vunpack.c.h.b16 %v1310
    %v1642 = vunpack.c.l.b16 %v1311
    %v1643 = vunpack.c.h.b16 %v1311
    %v1644 = vunpack.c.l.b16 %v1312
    %v1645 = vunpack.c.h.b16 %v1312
    %v1646 = vunpack.c.l.b16 %v1313
    %v1647 = vunpack.c.h.b16 %v1313
    %v1648 = vunpack.c.l.b16 %v1314
    %v1649 = vunpack.c.h.b16 %v1314
    %v1650 = vunpack.c.l.b16 %v1315
    %v1651 = vunpack.c.h.b16 %v1315
    %v1652 = vunpack.c.l.b16 %v1316
    %v1653 = vunpack.c.h.b16 %v1316
    %v1654 = vunpack.c.l.b16 %v1317
    %v1655 = vunpack.c.h.b16 %v1317
    %v1656 = vunpack.c.l.b16 %v1318
    %v1657 = vunpack.c.h.b16 %v1318
    %v1658 = vunpack.c.l.b16 %v1319
    %v1659 = vunpack.c.h.b16 %v1319
    %v1660 = vunpack.c.l.b16 %v1320
    %v1661 = vunpack.c.h.b16 %v1320
    %v1662 = vunpack.c.l.b16 %v1321
    %v1663 = vunpack.c.h.b16 %v1321
    %v1664 = vunpack.c.l.b16 %v1322
    %v1665 = vunpack.c.h.b16 %v1322
    %v1666 = vunpack.c.l.b16 %v1323
    %v1667 = vunpack.c.h.b16 %v1323
    %v1668 = vunpack.c.l.b16 %v1324
    %v1669 = vunpack.c.h.b16 %v1324
    %v1670 = vunpack.c.l.b16 %v1325
    %v1671 = vunpack.c.h.b16 %v1325
    %v1672 = vunpack.c.l.b16 %v1326
    %v1673 = vunpack.c.h.b16 %v1326
    %v1674 = vunpack.c.l.b16 %v1327
    %v1675 = vunpack.c.h.b16 %v1327
    %v1676 = vunpack.c.l.b16 %v1328
    %v1677 = vunpack.c.h.b16 %v1328
    %v1678 = vunpack.c.l.b16 %v1329
    %v1679 = vunpack.c.h.b16 %v1329
    %v1680 = vunpack.c.l.b16 %v1330
    %v1681 = vunpack.c.h.b16 %v1330
    %v1682 = vunpack.c.l.b16 %v1331
    %v1683 = vunpack.c.h.b16 %v1331
    %v1684 = vunpack.c.l.b16 %v1332
    %v1685 = vunpack.c.h.b16 %v1332
    %v1686 = vunpack.c.l.b16 %v1333
    %v1687 = vunpack.c.h.b16 %v1333
    %v1688 = vunpack.c.l.b16 %v1334
    %v1689 = vunpack.c.h.b16 %v1334
    %v1690 = vunpack.c.l.b16 %v1335
    %v1691 = vunpack.c.h.b16 %v1335
    %v1692 = vunpack.c.l.b16 %v1336
    %v1693 = vunpack.c.h.b16 %v1336
    %v1694 = vunpack.c.l.b16 %v1337
    %v1695 = vunpack.c.h.b16 %v1337
    %v1696 = vunpack.c.l.b16 %v1338
    %v1697 = vunpack.c.h.b16 %v1338
    %v1698 = vunpack.c.l.b16 %v1339
    %v1699 = vunpack.c.h.b16 %v1339
    %v1700 = vunpack.c.l.b16 %v1340
    %v1701 = vunpack.c.h.b16 %v1340
    %v1702 = vunpack.c.l.b16 %v1341
    %v1703 = vunpack.c.h.b16 %v1341
    %v1704 = vunpack.c.l.b16 %v1342
    %v1705 = vunpack.c.h.b16 %v1342
    %v1706 = vunpack.c.l.b16 %v1343
    %v1707 = vunpack.c.h.b16 %v1343
    %v1708 = vunpack.c.l.b16 %v1344
    %v1709 = vunpack.c.h.b16 %v1344
    %v1710 = vunpack.c.l.b16 %v1345
    %v1711 = vunpack.c.h.b16 %v1345
    %v1712 = vunpack.c.l.b16 %v1346
    %v1713 = vunpack.c.h.b16 %v1346
    %v1714 = vunpack.c.l.b16 %v1347
    %v1715 = vunpack.c.h.b16 %v1347
    %v1716 = vunpack.c.l.b16 %v1348
    %v1717 = vunpack.c.h.b16 %v1348
    %v1718 = vunpack.c.l.b16 %v1349
    %v1719 = vunpack.c.h.b16 %v1349
    %v1720 = vunpack.c.l.b16 %v1350
    %v1721 = vunpack.c.h.b16 %v1350
    %v1722 = vunpack.c.l.b16 %v1351
    %v1723 = vunpack.c.h.b16 %v1351
    %v1724 = vunpack.c.l.b16 %v1352
    %v1725 = vunpack.c.h.b16 %v1352
    %v1726 = vunpack.c.l.b16 %v1353
    %v1727 = vunpack.c.h.b16 %v1353
    %v1728 = vunpack.c.l.b16 %v1354
    %v1729 = vunpack.c.h.b16 %v1354
    %v1730 = vunpack.c.l.b16 %v1355
    %v1731 = vunpack.c.h.b16 %v1355
    %v1732 = vunpack.c.l.b16 %v1356
    %v1733 = vunpack.c.h.b16 %v1356
    %v1734 = vunpack.c.l.b16 %v1357
    %v1735 = vunpack.c.h.b16 %v1357
    %v1736 = vunpack.c.l.b16 %v1358
    %v1737 = vunpack.c.h.b16 %v1358
    %v1738 = vunpack.c.l.b16 %v1359
    %v1739 = vunpack.c.h.b16 %v1359
    %v1740 = vunpack.c.l.b16 %v1360
    %v1741 = vunpack.c.h.b16 %v1360
    %v1742 = vunpack.c.l.b16 %v1361
    %v1743 = vunpack.c.h.b16 %v1361
    %v1744 = vunpack.c.l.b16 %v1362
    %v1745 = vunpack.c.h.b16 %v1362
    %v1746 = vunpack.c.l.b16 %v1363
    %v1747 = vunpack.c.h.b16 %v1363
    %v1748 = vunpack.c.l.b16 %v1364
    %v1749 = vunpack.c.h.b16 %v1364
    %v1750 = vunpack.c.l.b16 %v1365
    %v1751 = vunpack.c.h.b16 %v1365
    %v1752 = vunpack.c.l.b16 %v1366
    %v1753 = vunpack.c.h.b16 %v1366
    %v1754 = vunpack.c.l.b16 %v1367
    %v1755 = vunpack.c.h.b16 %v1367
    %v1756 = vunpack.c.l.b16 %v1368
    %v1757 = vunpack.c.h.b16 %v1368
    %v1758 = vunpack.c.l.b16 %v1369
    %v1759 = vunpack.c.h.b16 %v1369
    %v1760 = vunpack.c.l.b16 %v1370
    %v1761 = vunpack.c.h.b16 %v1370
    %v1762 = vunpack.c.l.b16 %v1371
    %v1763 = vunpack.c.h.b16 %v1371
    %v1764 = vunpack.c.l.b16 %v1372
    %v1765 = vunpack.c.h.b16 %v1372
    %v1766 = vunpack.c.l.b16 %v1373
    %v1767 = vunpack.c.h.b16 %v1373
    %v1768 = vpack.c.b16 %v1516, %v1512
    %v1769 = vpack.c.b16 %v1517, %v1513
    %v1770 = vpack.c.b16 %v1518, %v1514
    %v1771 = vpack.c.b16 %v1519, %v1515
    %v1772 = vpack.c.b16 %v1524, %v1520
    %v1773 = vpack.c.b16 %v1525, %v1521
    %v1774 = vpack.c.b16 %v1526, %v1522
    %v1775 = vpack.c.b16 %v1527, %v1523
    %v1776 = vpack.c.b16 %v1532, %v1528
    %v1777 = vpack.c.b16 %v1533, %v1529
    %v1778 = vpack.c.b16 %v1534, %v1530
    %v1779 = vpack.c.b16 %v1535, %v1531
    %v1780 = vpack.c.b16 %v1540, %v1536
    %v1781 = vpack.c.b16 %v1541, %v1537
    %v1782 = vpack.c.b16 %v1542, %v1538
    %v1783 = vpack.c.b16 %v1543, %v1539
    %v1784 = vpack.c.b16 %v1548, %v1544
    %v1785 = vpack.c.b16 %v1549, %v1545
    %v1786 = vpack.c.b16 %v1550, %v1546
    %v1787 = vpack.c.b16 %v1551, %v1547
    %v1788 = vpack.c.b16 %v1556, %v1552
    %v1789 = vpack.c.b16 %v1557, %v1553
    %v1790 = vpack.c.b16 %v1558, %v1554
    %v1791 = vpack.c.b16 %v1559, %v1555
    %v1792 = vpack.c.b16 %v1564, %v1560
    %v1793 = vpack.c.b16 %v1565, %v1561
    %v1794 = vpack.c.b16 %v1566, %v1562
    %v1795 = vpack.c.b16 %v1567, %v1563
    %v1796 = vpack.c.b16 %v1572, %v1568
    %v1797 = vpack.c.b16 %v1573, %v1569
    %v1798 = vpack.c.b16 %v1574, %v1570
    %v1799 = vpack.c.b16 %v1575, %v1571
    %v1800 = vpack.c.b16 %v1580, %v1576
    %v1801 = vpack.c.b16 %v1581, %v1577
    %v1802 = vpack.c.b16 %v1582, %v1578
    %v1803 = vpack.c.b16 %v1583, %v1579
    %v1804 = vpack.c.b16 %v1588, %v1584
    %v1805 = vpack.c.b16 %v1589, %v1585
    %v1806 = vpack.c.b16 %v1590, %v1586
    %v1807 = vpack.c.b16 %v1591, %v1587
    %v1808 = vpack.c.b16 %v1596, %v1592
    %v1809 = vpack.c.b16 %v1597, %v1593
    %v1810 = vpack.c.b16 %v1598, %v1594
    %v1811 = vpack.c.b16 %v1599, %v1595
    %v1812 = vpack.c.b16 %v1604, %v1600
    %v1813 = vpack.c.b16 %v1605, %v1601
    %v1814 = vpack.c.b16 %v1606, %v1602
    %v1815 = vpack.c.b16 %v1607, %v1603
    %v1816 = vpack.c.b16 %v1612, %v1608
    %v1817 = vpack.c.b16 %v1613, %v1609
    %v1818 = vpack.c.b16 %v1614, %v1610
    %v1819 = vpack.c.b16 %v1615, %v1611
    %v1820 = vpack.c.b16 %v1620, %v1616
    %v1821 = vpack.c.b16 %v1621, %v1617
    %v1822 = vpack.c.b16 %v1622, %v1618
    %v1823 = vpack.c.b16 %v1623, %v1619
    %v1824 = vpack.c.b16 %v1628, %v1624
    %v1825 = vpack.c.b16 %v1629, %v1625
    %v1826 = vpack.c.b16 %v1630, %v1626
    %v1827 = vpack.c.b16 %v1631, %v1627
    %v1828 = vpack.c.b16 %v1636, %v1632
    %v1829 = vpack.c.b16 %v1637, %v1633
    %v1830 = vpack.c.b16 %v1638, %v1634
    %v1831 = vpack.c.b16 %v1639, %v1635
    %v1832 = vpack.c.b16 %v1644, %v1640
    %v1833 = vpack.c.b16 %v1645, %v1641
    %v1834 = vpack.c.b16 %v1646, %v1642
    %v1835 = vpack.c.b16 %v1647, %v1643
    %v1836 = vpack.c.b16 %v1652, %v1648
    %v1837 = vpack.c.b16 %v1653, %v1649
    %v1838 = vpack.c.b16 %v1654, %v1650
    %v1839 = vpack.c.b16 %v1655, %v1651
    %v1840 = vpack.c.b16 %v1660, %v1656
    %v1841 = vpack.c.b16 %v1661, %v1657
    %v1842 = vpack.c.b16 %v1662, %v1658
    %v1843 = vpack.c.b16 %v1663, %v1659
    %v1844 = vpack.c.b16 %v1668, %v1664
    %v1845 = vpack.c.b16 %v1669, %v1665
    %v1846 = vpack.c.b16 %v1670, %v1666
    %v1847 = vpack.c.b16 %v1671, %v1667
    %v1848 = vpack.c.b16 %v1676, %v1672
    %v1849 = vpack.c.b16 %v1677, %v1673
    %v1850 = vpack.c.b16 %v1678, %v1674
    %v1851 = vpack.c.b16 %v1679, %v1675
    %v1852 = vpack.c.b16 %v1684, %v1680
    %v1853 = vpack.c.b16 %v1685, %v1681
    %v1854 = vpack.c.b16 %v1686, %v1682
    %v1855 = vpack.c.b16 %v1687, %v1683
    %v1856 = vpack.c.b16 %v1692, %v1688
    %v1857 = vpack.c.b16 %v1693, %v1689
    %v1858 = vpack.c.b16 %v1694, %v1690
    %v1859 = vpack.c.b16 %v1695, %v1691
    %v1860 = vpack.c.b16 %v1700, %v1696
    %v1861 = vpack.c.b16 %v1701, %v1697
    %v1862 = vpack.c.b16 %v1702, %v1698
    %v1863 = vpack.c.b16 %v1703, %v1699
    %v1864 = vpack.c.b16 %v1708, %v1704
    %v1865 = vpack.c.b16 %v1709, %v1705
    %v1866 = vpack.c.b16 %v1710, %v1706
    %v1867 = vpack.c.b16 %v1711, %v1707
    %v1868 = vpack.c.b16 %v1716, %v1712
    %v1869 = vpack.c.b16 %v1717, %v1713
    %v1870 = vpack.c.b16 %v1718, %v1714
    %v1871 = vpack.c.b16 %v1719, %v1715
    %v1872 = vpack.c.b16 %v1724, %v1720
    %v1873 = vpack.c.b16 %v1725, %v1721
    %v1874 = vpack.c.b16 %v1726, %v1722
    %v1875 = vpack.c.b16 %v1727, %v1723
    %v1876 = vpack.c.b16 %v1732, %v1728
    %v1877 = vpack.c.b16 %v1733, %v1729
    %v1878 = vpack.c.b16 %v1734, %v1730
    %v1879 = vpack.c.b16 %v1735, %v1731
    %v1880 = vpack.c.b16 %v1740, %v1736
    %v1881 = vpack.c.b16 %v1741, %v1737
    %v1882 = vpack.c.b16 %v1742, %v1738
    %v1883 = vpack.c.b16 %v1743, %v1739
    %v1884 = vpack.c.b16 %v1748, %v1744
    %v1885 = vpack.c.b16 %v1749, %v1745
    %v1886 = vpack.c.b16 %v1750, %v1746
    %v1887 = vpack.c.b16 %v1751, %v1747
    %v1888 = vpack.c.b16 %v1756, %v1752
    %v1889 = vpack.c.b16 %v1757, %v1753
    %v1890 = vpack.c.b16 %v1758, %v1754
    %v1891 = vpack.c.b16 %v1759, %v1755
    %v1892 = vpack.c.b16 %v1764, %v1760
    %v1893 = vpack.c.b16 %v1765, %v1761
    %v1894 = vpack.c.b16 %v1766, %v1762
    %v1895 = vpack.c.b16 %v1767, %v1763
    %2024 = vmatpush.bf16.msra.mxu0 %v1796
    %2025 = vmatpush.bf16.msra.mxu0 %v1792
    %2026 = vmatpush.bf16.msra.mxu0 %v1788
    %2027 = vmatpush.bf16.msra.mxu0 %v1784
    %2028 = vmatpush.bf16.msra.mxu0 %v1780
    %2029 = vmatpush.bf16.msra.mxu0 %v1776
    %2030 = vmatpush.bf16.msra.mxu0 %v1772
    %2031 = vmatpush.bf16.msra.mxu0 %v1768
    %2032 = vmatmul.bf16.gmra.mxu0 %v1242
    %v2033 = vpop.f32.mrf.mxu0
    %v2034 = vadd.f32 %v1376, %v2033
    %v2035 = vpop.f32.mrf.mxu0
    %2036 = vdwg.mxu0
    %2037 = vmatpush.bf16.msra.mxu0 %v1828
    %2038 = vmatpush.bf16.msra.mxu0 %v1824
    %2039 = vmatpush.bf16.msra.mxu0 %v1820
    %2040 = vmatpush.bf16.msra.mxu0 %v1816
    %2041 = vmatpush.bf16.msra.mxu0 %v1812
    %2042 = vmatpush.bf16.msra.mxu0 %v1808
    %2043 = vmatpush.bf16.msra.mxu0 %v1804
    %2044 = vmatpush.bf16.msra.mxu0 %v1800
    %2045 = vmatmul.bf16.gmra.mxu0 %v1243
    %v2046 = vpop.f32.mrf.mxu0
    %v2047 = vadd.f32 %v2034, %v2046
    %v2048 = vpop.f32.mrf.mxu0
    %2049 = vdwg.mxu0
    %2050 = vmatpush.bf16.msra.mxu0 %v1860
    %2051 = vmatpush.bf16.msra.mxu0 %v1856
    %2052 = vmatpush.bf16.msra.mxu0 %v1852
    %2053 = vmatpush.bf16.msra.mxu0 %v1848
    %2054 = vmatpush.bf16.msra.mxu0 %v1844
    %2055 = vmatpush.bf16.msra.mxu0 %v1840
    %2056 = vmatpush.bf16.msra.mxu0 %v1836
    %2057 = vmatpush.bf16.msra.mxu0 %v1832
    %2058 = vmatmul.bf16.gmra.mxu0 %v1244
    %v2059 = vpop.f32.mrf.mxu0
    %v2060 = vadd.f32 %v2047, %v2059
    %v2061 = vpop.f32.mrf.mxu0
    %2062 = vdwg.mxu0
    %2063 = vmatpush.bf16.msra.mxu0 %v1892
    %2064 = vmatpush.bf16.msra.mxu0 %v1888
    %2065 = vmatpush.bf16.msra.mxu0 %v1884
    %2066 = vmatpush.bf16.msra.mxu0 %v1880
    %2067 = vmatpush.bf16.msra.mxu0 %v1876
    %2068 = vmatpush.bf16.msra.mxu0 %v1872
    %2069 = vmatpush.bf16.msra.mxu0 %v1868
    %2070 = vmatpush.bf16.msra.mxu0 %v1864
    %2071 = vmatmul.bf16.gmra.mxu0 %v1245
    %v2072 = vpop.f32.mrf.mxu0
    %v2073 = vadd.f32 %v2060, %v2072
    %v2074 = vpop.f32.mrf.mxu0
    %2075 = vdwg.mxu0
    %2076 = vmatpush.bf16.msra.mxu0 %v1797
    %2077 = vmatpush.bf16.msra.mxu0 %v1793
    %2078 = vmatpush.bf16.msra.mxu0 %v1789
    %2079 = vmatpush.bf16.msra.mxu0 %v1785
    %2080 = vmatpush.bf16.msra.mxu0 %v1781
    %2081 = vmatpush.bf16.msra.mxu0 %v1777
    %2082 = vmatpush.bf16.msra.mxu0 %v1773
    %2083 = vmatpush.bf16.msra.mxu0 %v1769
    %2084 = vmatmul.bf16.gmra.mxu0 %v1242
    %v2085 = vpop.f32.mrf.mxu0
    %v2086 = vadd.f32 %v1377, %v2085
    %v2087 = vpop.f32.mrf.mxu0
    %2088 = vdwg.mxu0
    %2089 = vmatpush.bf16.msra.mxu0 %v1829
    %2090 = vmatpush.bf16.msra.mxu0 %v1825
    %2091 = vmatpush.bf16.msra.mxu0 %v1821
    %2092 = vmatpush.bf16.msra.mxu0 %v1817
    %2093 = vmatpush.bf16.msra.mxu0 %v1813
    %2094 = vmatpush.bf16.msra.mxu0 %v1809
    %2095 = vmatpush.bf16.msra.mxu0 %v1805
    %2096 = vmatpush.bf16.msra.mxu0 %v1801
    %2097 = vmatmul.bf16.gmra.mxu0 %v1243
    %v2098 = vpop.f32.mrf.mxu0
    %v2099 = vadd.f32 %v2086, %v2098
    %v2100 = vpop.f32.mrf.mxu0
    %2101 = vdwg.mxu0
    %2102 = vmatpush.bf16.msra.mxu0 %v1861
    %2103 = vmatpush.bf16.msra.mxu0 %v1857
    %2104 = vmatpush.bf16.msra.mxu0 %v1853
    %2105 = vmatpush.bf16.msra.mxu0 %v1849
    %2106 = vmatpush.bf16.msra.mxu0 %v1845
    %2107 = vmatpush.bf16.msra.mxu0 %v1841
    %2108 = vmatpush.bf16.msra.mxu0 %v1837
    %2109 = vmatpush.bf16.msra.mxu0 %v1833
    %2110 = vmatmul.bf16.gmra.mxu0 %v1244
    %v2111 = vpop.f32.mrf.mxu0
    %v2112 = vadd.f32 %v2099, %v2111
    %v2113 = vpop.f32.mrf.mxu0
    %2114 = vdwg.mxu0
    %2115 = vmatpush.bf16.msra.mxu0 %v1893
    %2116 = vmatpush.bf16.msra.mxu0 %v1889
    %2117 = vmatpush.bf16.msra.mxu0 %v1885
    %2118 = vmatpush.bf16.msra.mxu0 %v1881
    %2119 = vmatpush.bf16.msra.mxu0 %v1877
    %2120 = vmatpush.bf16.msra.mxu0 %v1873
    %2121 = vmatpush.bf16.msra.mxu0 %v1869
    %2122 = vmatpush.bf16.msra.mxu0 %v1865
    %2123 = vmatmul.bf16.gmra.mxu0 %v1245
    %v2124 = vpop.f32.mrf.mxu0
    %v2125 = vadd.f32 %v2112, %v2124
    %v2126 = vpop.f32.mrf.mxu0
    %2127 = vdwg.mxu0
    %2128 = vmatpush.bf16.msra.mxu0 %v1798
    %2129 = vmatpush.bf16.msra.mxu0 %v1794
    %2130 = vmatpush.bf16.msra.mxu0 %v1790
    %2131 = vmatpush.bf16.msra.mxu0 %v1786
    %2132 = vmatpush.bf16.msra.mxu0 %v1782
    %2133 = vmatpush.bf16.msra.mxu0 %v1778
    %2134 = vmatpush.bf16.msra.mxu0 %v1774
    %2135 = vmatpush.bf16.msra.mxu0 %v1770
    %2136 = vmatmul.bf16.gmra.mxu0 %v1242
    %v2137 = vpop.f32.mrf.mxu0
    %v2138 = vadd.f32 %v1378, %v2137
    %v2139 = vpop.f32.mrf.mxu0
    %2140 = vdwg.mxu0
    %2141 = vmatpush.bf16.msra.mxu0 %v1830
    %2142 = vmatpush.bf16.msra.mxu0 %v1826
    %2143 = vmatpush.bf16.msra.mxu0 %v1822
    %2144 = vmatpush.bf16.msra.mxu0 %v1818
    %2145 = vmatpush.bf16.msra.mxu0 %v1814
    %2146 = vmatpush.bf16.msra.mxu0 %v1810
    %2147 = vmatpush.bf16.msra.mxu0 %v1806
    %2148 = vmatpush.bf16.msra.mxu0 %v1802
    %2149 = vmatmul.bf16.gmra.mxu0 %v1243
    %v2150 = vpop.f32.mrf.mxu0
    %v2151 = vadd.f32 %v2138, %v2150
    %v2152 = vpop.f32.mrf.mxu0
    %2153 = vdwg.mxu0
    %2154 = vmatpush.bf16.msra.mxu0 %v1862
    %2155 = vmatpush.bf16.msra.mxu0 %v1858
    %2156 = vmatpush.bf16.msra.mxu0 %v1854
    %2157 = vmatpush.bf16.msra.mxu0 %v1850
    %2158 = vmatpush.bf16.msra.mxu0 %v1846
    %2159 = vmatpush.bf16.msra.mxu0 %v1842
    %2160 = vmatpush.bf16.msra.mxu0 %v1838
    %2161 = vmatpush.bf16.msra.mxu0 %v1834
    %2162 = vmatmul.bf16.gmra.mxu0 %v1244
    %v2163 = vpop.f32.mrf.mxu0
    %v2164 = vadd.f32 %v2151, %v2163
    %v2165 = vpop.f32.mrf.mxu0
    %2166 = vdwg.mxu0
    %2167 = vmatpush.bf16.msra.mxu0 %v1894
    %2168 = vmatpush.bf16.msra.mxu0 %v1890
    %2169 = vmatpush.bf16.msra.mxu0 %v1886
    %2170 = vmatpush.bf16.msra.mxu0 %v1882
    %2171 = vmatpush.bf16.msra.mxu0 %v1878
    %2172 = vmatpush.bf16.msra.mxu0 %v1874
    %2173 = vmatpush.bf16.msra.mxu0 %v1870
    %2174 = vmatpush.bf16.msra.mxu0 %v1866
    %2175 = vmatmul.bf16.gmra.mxu0 %v1245
    %v2176 = vpop.f32.mrf.mxu0
    %v2177 = vadd.f32 %v2164, %v2176
    %v2178 = vpop.f32.mrf.mxu0
    %2179 = vdwg.mxu0
    %2180 = vmatpush.bf16.msra.mxu0 %v1799
    %2181 = vmatpush.bf16.msra.mxu0 %v1795
    %2182 = vmatpush.bf16.msra.mxu0 %v1791
    %2183 = vmatpush.bf16.msra.mxu0 %v1787
    %2184 = vmatpush.bf16.msra.mxu0 %v1783
    %2185 = vmatpush.bf16.msra.mxu0 %v1779
    %2186 = vmatpush.bf16.msra.mxu0 %v1775
    %2187 = vmatpush.bf16.msra.mxu0 %v1771
    %2188 = vmatmul.bf16.gmra.mxu0 %v1242
    %v2189 = vpop.f32.mrf.mxu0
    %v2190 = vadd.f32 %v1379, %v2189
    %v2191 = vpop.f32.mrf.mxu0
    %2192 = vdwg.mxu0
    %2193 = vmatpush.bf16.msra.mxu0 %v1831
    %2194 = vmatpush.bf16.msra.mxu0 %v1827
    %2195 = vmatpush.bf16.msra.mxu0 %v1823
    %2196 = vmatpush.bf16.msra.mxu0 %v1819
    %2197 = vmatpush.bf16.msra.mxu0 %v1815
    %2198 = vmatpush.bf16.msra.mxu0 %v1811
    %2199 = vmatpush.bf16.msra.mxu0 %v1807
    %2200 = vmatpush.bf16.msra.mxu0 %v1803
    %2201 = vmatmul.bf16.gmra.mxu0 %v1243
    %v2202 = vpop.f32.mrf.mxu0
    %v2203 = vadd.f32 %v2190, %v2202
    %v2204 = vpop.f32.mrf.mxu0
    %2205 = vdwg.mxu0
    %2206 = vmatpush.bf16.msra.mxu0 %v1863
    %2207 = vmatpush.bf16.msra.mxu0 %v1859
    %2208 = vmatpush.bf16.msra.mxu0 %v1855
    %2209 = vmatpush.bf16.msra.mxu0 %v1851
    %2210 = vmatpush.bf16.msra.mxu0 %v1847
    %2211 = vmatpush.bf16.msra.mxu0 %v1843
    %2212 = vmatpush.bf16.msra.mxu0 %v1839
    %2213 = vmatpush.bf16.msra.mxu0 %v1835
    %2214 = vmatmul.bf16.gmra.mxu0 %v1244
    %v2215 = vpop.f32.mrf.mxu0
    %v2216 = vadd.f32 %v2203, %v2215
    %v2217 = vpop.f32.mrf.mxu0
    %2218 = vdwg.mxu0
    %2219 = vmatpush.bf16.msra.mxu0 %v1895
    %2220 = vmatpush.bf16.msra.mxu0 %v1891
    %2221 = vmatpush.bf16.msra.mxu0 %v1887
    %2222 = vmatpush.bf16.msra.mxu0 %v1883
    %2223 = vmatpush.bf16.msra.mxu0 %v1879
    %2224 = vmatpush.bf16.msra.mxu0 %v1875
    %2225 = vmatpush.bf16.msra.mxu0 %v1871
    %2226 = vmatpush.bf16.msra.mxu0 %v1867
    %2227 = vmatmul.bf16.gmra.mxu0 %v1245
    %v2228 = vpop.f32.mrf.mxu0
    %v2229 = vadd.f32 %v2216, %v2228
    %v2230 = vpop.f32.mrf.mxu0
    %2231 = vdwg.mxu0
    %v2232 = vld [vmem:[#allocation12] sm:$0xf]
    %v2234 = vperm.slane %v2232, 0
    %v2235 = vperm.slane %v2232, 1
    %v2236 = vperm.slane %v2232, 2
    %v2237 = vperm.slane %v2232, 3
    %v2242 = vmul.f32 %v2073, %v2234
    %v2243 = vmul.f32 %v2125, %v2235
    %v2244 = vmul.f32 %v2177, %v2236
    %v2245 = vmul.f32 %v2229, %v2237
    %v2246 = vsel %vm1129, %v2242, 0.0
    %v2247 = vsel %vm1129, %v2243, 0.0
    %v2248 = vadd.f32 %v2246, %v2247
    %v2249 = vsel %vm1129, %v2244, 0.0
    %v2250 = vadd.f32 %v2248, %v2249
    %v2251 = vsel %vm1129, %v2245, 0.0
    %v2252 = vadd.f32 %v2250, %v2251
    %2253 = vadd.xlane.f32.xlu0 %v2252
    %v2254 = vpop.xlane.xlu0 %2253
    %v2255 = vld [vmem:[#allocation2] sm:$0x1]
    %v2257 = vperm.slane %v2255, 0
    %v2259 = vadd.f32 %v2254, %v2257
    %v2260 = vxor.u32 %v2259, 2147483648
    %v2261 = vmul.f32 %v2260, 1.442695
    %v2262 = vpow.pop %v2261
    %v2263 = vadd.f32 %v2262, 1.0
    %v2264 = vrcp.pop %v2263
    %v2265 = vmul.f32 %v2263, %v2264
    %v2266 = vsub.f32 1.0, %v2265
    %v2267 = vmul.f32 %v2264, %v2266
    %v2268 = vadd.f32 %v2264, %v2267
    %vm2269 = vweird.f32 %v2263
    %vm2270 = vweird.f32 %v2264
    %vm2271 = vmor %vm2269, %vm2270
    %v2272 = vsel %vm2271, %v2264, %v2268
    %v2273 = vand.u32 2147483647, %v2263
    %vm2274 = vcmp.eq.f32.partialorder %v2273, 8.507059e+37
    %v2275 = vand.u32 %v2263, 2147483648
    %v2276 = vor.u32 1.1754944e-38, %v2275
    %v2277 = vsel %vm2274, %v2276, %v2272
    %v2278 = vmul.f32 1.0, %v2277
    %v2279 = vmul.f32 %v2278, 60.0
    %v2280 = vsub.f32 %v2279, 30.0
    %2282 = vset.pattern.permute.xlu0 0
    %2283 = vperm.xlu0 %2282, %v2280
    %v2284 = vpop.permute.xlu0 %2283
    %2286 = vst.msk [vmem:[#allocation15] sm:$0x3] %vm1240, %v2284
    // Predicated region
    $region58: #{tpu_custom_call.1} parent=1 // pred_check
      _
    $region59: #{tpu_custom_call.1} parent=1 // pred_check_branch
      %2288 = sbr.rel (0) target = $region61
    $region60: #{tpu_custom_call.1} parent=1 // pred_region
      %2290 = vsyncadd [#allocation5], 0
      %s2292 = sshll.u32 [#allocation14], 4
      %s2293 = int_to_ptr.vmem [resolvable:$true] %s2292
      %s2294 = sshll.u32 %s8, 4
      %s2295 = int_to_ptr.hbm [resolvable:$true] %s2294
      %2297 = dma.vmem_to_hbm [thread:$0]  %s2293, 32, %s2295, [#allocation5]
    $region61: #{tpu_custom_call.1} parent=1 // pred_fallthru
      _
    // Predicated region
    $region62: #{tpu_custom_call.1} parent=1 // pred_check
      _
    $region63: #{tpu_custom_call.1} parent=1 // pred_check_branch
      %2299 = sbr.rel (0) target = $region65
    $region64: #{tpu_custom_call.1} parent=1 // pred_region
      %2301 = vsyncadd [#allocation16], 0
      %s2303 = sshll.u32 [#allocation15], 4
      %s2304 = int_to_ptr.vmem [resolvable:$true] %s2303
      %s2305 = sshll.u32 %s9, 4
      %s2306 = int_to_ptr.hbm [resolvable:$true] %s2305
      %2308 = dma.vmem_to_hbm [thread:$0]  %s2304, 32, %s2306, [#allocation16]
    $region65: #{tpu_custom_call.1} parent=1 // pred_fallthru
      _
    // Predicated region
    $region66: #{tpu_custom_call.1} parent=1 // pred_check
      _
    $region67: #{tpu_custom_call.1} parent=1 // pred_check_branch
      %2310 = sbr.rel (0) target = $region69
    $region68: #{tpu_custom_call.1} parent=1 // pred_region
      %2312 = vsyncadd [#allocation16], 0
      %s2314 = sshll.u32 [#allocation17], 4
      %s2315 = int_to_ptr.vmem [resolvable:$true] %s2314
      %s2316 = sshll.u32 %s10, 4
      %s2317 = int_to_ptr.hbm [resolvable:$true] %s2316
      %2319 = dma.vmem_to_hbm [thread:$0]  %s2315, 128, %s2317, [#allocation16]
    $region69: #{tpu_custom_call.1} parent=1 // pred_fallthru
      _
    // Predicated region
    $region70: #{tpu_custom_call.1} parent=1 // pred_check
      _
    $region71: #{tpu_custom_call.1} parent=1 // pred_check_branch
      %2321 = sbr.rel (0) target = $region73
    $region72: #{tpu_custom_call.1} parent=1 // pred_region
      %2323 = dma.done [#allocation5], 32
    $region73: #{tpu_custom_call.1} parent=1 // pred_fallthru
      _
    // Predicated region
    $region74: #{tpu_custom_call.1} parent=1 // pred_check
      _
    $region75: #{tpu_custom_call.1} parent=1 // pred_check_branch
      %2325 = sbr.rel (0) target = $region77
    $region76: #{tpu_custom_call.1} parent=1 // pred_region
      %2327 = dma.done [#allocation16], 32
    $region77: #{tpu_custom_call.1} parent=1 // pred_fallthru
      _
    // Predicated region
    $region78: #{tpu_custom_call.1} parent=1 // pred_check
      _
    $region79: #{tpu_custom_call.1} parent=1 // pred_check_branch
      %2329 = sbr.rel (0) target = $region81
    $region80: #{tpu_custom_call.1} parent=1 // pred_region
      %2331 = dma.done [#allocation16], 128
    $region81: #{tpu_custom_call.1} parent=1 // pred_fallthru
      _
    %2332 = vsyncpa [#allocation4], 1
    %2333 = vsyncpa [#allocation7], 1
    %2334 = vsyncpa [#allocation10], 1
    %2335 = vsyncpa [#allocation13], 1
    %2336 = vsyncpa [#allocation5], 1
    %2337 = vsyncpa [#allocation16], 1

</llo_original>
